<compile_context>
chip_gen: v7x
topology: tpu7x:2x2x1
jax: 0.10.0
libtpu: 0.0.40
codegen_flags: <defaults>
</compile_context>

<pallas_src>
import functools

import jax
import jax.numpy as jnp
from jax.experimental import pallas as pl

# ---- problem sizes (small, consistent with the module) ---------------------
N = 2            # batch
SEQ = 8          # value_len == key_len == query_len
EMBED = 32       # embed_size
HEADS = 4
HEAD_DIM = EMBED // HEADS
FWD_EXP = 2      # forward_expansion
HIDDEN = FWD_EXP * EMBED
HIDDEN_PAD = 128   # FFN hidden lane-padded 64 -> 128 (zero pad, exact)
EPS = 1e-5


def _layernorm(x, gamma, beta):
    mu = jnp.mean(x, axis=-1, keepdims=True)
    var = jnp.mean((x - mu) ** 2, axis=-1, keepdims=True)
    return (x - mu) * jax.lax.rsqrt(var + EPS) * gamma + beta


def transformer_block_kernel(
    qkv_ref,      # (H*N*L, 3D)  head-major rows, lanes = [q | k | v] features
    qres_ref,     # (N*L, E)     original query (flat) for the residual
    mbias_ref,    # (H*N, Lq, Lk) additive mask bias (0 / -1e20), f32
    wqkv_ref,     # (3D, 3D)     block-diag [Wq^T/sqrt(E), Wk^T, Wv^T], bf16
    woh_ref,      # (H, D, E)    per-head row-blocks of Wo^T, bf16
    w1_ref,       # (E, HIDDEN_PAD) bf16
    w2_ref,       # (HIDDEN_PAD, E) bf16
    prm_ref,      # (8, 128) f32: rows = bo, g1, b1, bf1(128), bf2, g2, b2, -
    out_ref,      # (N*L, E) f32
    *, n, h, l, d, e,
):
    f32 = jnp.float32
    bf16 = jnp.bfloat16
    bh = h * n

    # ---- unpack the packed parameter slab (one DMA for 7 small vectors) ----
    prm = prm_ref[...]
    bo  = prm[0:1, 0:e]
    g1  = prm[1:2, 0:e]
    b1  = prm[2:3, 0:e]
    bf1 = prm[3:4, :]          # full 128 lanes (padded tail is zero)
    bf2 = prm[4:5, 0:e]
    g2  = prm[5:6, 0:e]
    b2  = prm[6:7, 0:e]

    # ---- fused per-head Q/K/V projection: a single bf16 MXU push -----------
    # 1/sqrt(E) is already folded into the Q block of the fused weight.
    qkvp = jnp.dot(qkv_ref[...].astype(bf16), wqkv_ref[...],
                   preferred_element_type=f32)                  # (bh*l, 3d)
    qkvp = qkvp.reshape(bh, l, 3 * d)
    qp = qkvp[:, :, 0:d]
    kp = qkvp[:, :, d:2 * d]
    vp = qkvp[:, :, 2 * d:3 * d]

    # ---- head-batched attention (bf16 operands, f32 accumulation) ----------
    energy = jnp.einsum("bqd,bkd->bqk", qp.astype(bf16), kp.astype(bf16),
                        preferred_element_type=f32)             # (bh, l, l)
    energy = energy + mbias_ref[...]                            # additive mask
    energy = energy - jnp.max(energy, axis=-1, keepdims=True)
    p = jnp.exp(energy)
    denom = jnp.maximum(jnp.sum(p, axis=-1, keepdims=True), 1e-30)
    attn = p * pl.reciprocal(denom, approx=True)
    o = jnp.einsum("bqk,bkd->bqd", attn.astype(bf16), vp.astype(bf16),
                   preferred_element_type=f32)                  # (bh, l, d)

    # ---- fc_out fused with the head merge -----------------------------------
    #   out[n,q,:] = sum_h O[h,n,q,:] @ Wo^T[h*D:(h+1)*D, :]
    # bh is head-major, so this is a plain reshape (no transpose) followed by an
    # H-batched matmul against the un-tiled (H, D, E) weight and a leading-axis
    # sum.
    o_r = o.reshape(h, n * l, d)
    ph = jnp.einsum("hmd,hde->hme", o_r.astype(bf16), woh_ref[...],
                    preferred_element_type=f32)                 # (h, n*l, e)
    att = ph.sum(axis=0) + bo                                   # (n*l, e)

    # x = dropout(norm1(attention + query))   (dropout == identity, eval mode)
    x = _layernorm(att + qres_ref[...], g1, b1)

    # feed-forward: Linear -> ReLU -> Linear (hidden lane-padded to 128)
    h1 = jnp.dot(x.astype(bf16), w1_ref[...], preferred_element_type=f32) + bf1
    h1 = jnp.maximum(h1, 0.0)
    ff = jnp.dot(h1.astype(bf16), w2_ref[...], preferred_element_type=f32) + bf2

    # out = dropout(norm2(forward + x))
    out_ref[...] = _layernorm(ff + x, g2, b2).astype(out_ref.dtype)


def prepare_params(raw):
    """One-time weight preprocessing (hoisted out of the per-call path)."""
    e, h, d = EMBED, HEADS, HEAD_DIM
    scale = 1.0 / (float(e) ** 0.5)

    # fused block-diagonal QKV weight; 1/sqrt(E) folded into the Q block
    w_qkv = jax.scipy.linalg.block_diag(
        raw["wq"].T * scale, raw["wk"].T, raw["wv"].T).astype(jnp.bfloat16)

    # per-head row-blocks of Wo^T (NOT tiled over batch)
    wo_h = raw["wo"].T.reshape(h, d, e).astype(jnp.bfloat16)     # (H, D, E)

    # FFN weights, hidden lane-padded 64 -> 128 with zeros (padding adds 0)
    w1p = (jnp.zeros((e, HIDDEN_PAD), jnp.float32)
           .at[:, :HIDDEN].set(raw["w1"].T)).astype(jnp.bfloat16)
    w2p = (jnp.zeros((HIDDEN_PAD, e), jnp.float32)
           .at[:HIDDEN, :].set(raw["w2"].T)).astype(jnp.bfloat16)

    # packed small parameters: one lane-dense (8, 128) f32 slab
    prm = jnp.zeros((8, 128), jnp.float32)
    prm = prm.at[0, :e].set(raw["bo"])
    prm = prm.at[1, :e].set(raw["g1"])
    prm = prm.at[2, :e].set(raw["b1"])
    prm = prm.at[3, :HIDDEN].set(raw["bf1"])
    prm = prm.at[4, :e].set(raw["bf2"])
    prm = prm.at[5, :e].set(raw["g2"])
    prm = prm.at[6, :e].set(raw["b2"])

    return {"wqkv": w_qkv, "woh": wo_h, "w1": w1p, "w2": w2p, "prm": prm}


@jax.jit
def transformer_block(value, key, query, mask, params):
    """value/key/query: (N, L, E); mask: (N, H, Lq, Lk); params: prepare_params."""
    n, lq, e = query.shape
    lk = key.shape[1]
    assert value.shape[1] == lk == lq, "fused QKV path assumes equal q/k/v lengths"
    h, d = HEADS, HEAD_DIM
    bh = h * n

    # per-call activation layout (tiny; fused by XLA under jit)
    def to_heads(x):   # (N, L, E) -> (H*N, L, D), head-major flattened batch
        return x.reshape(n, lq, h, d).transpose(2, 0, 1, 3).reshape(bh, lq, d)

    qkv_hm = jnp.concatenate(
        [to_heads(query), to_heads(key), to_heads(value)], axis=-1
    ).reshape(bh * lq, 3 * d)                                    # (H*N*L, 3D)
    q_res = query.reshape(n * lq, e)                             # (N*L, E)
    mask_bias = jnp.where(mask == 0, jnp.float32(-1e20), jnp.float32(0.0))
    mask_bias = mask_bias.transpose(1, 0, 2, 3).reshape(bh, lq, lk)  # (H*N,Lq,Lk)

    kernel = functools.partial(transformer_block_kernel, n=n, h=h, l=lq, d=d, e=e)
    # Gridless call: one invocation, every operand resident in VMEM once
    # (no pipeline machinery / double-buffering needed for a single step).
    out_flat = pl.pallas_call(
        kernel,
        out_shape=jax.ShapeDtypeStruct((n * lq, e), jnp.float32),
    )(qkv_hm, q_res, mask_bias,
      params["wqkv"], params["woh"], params["w1"], params["w2"], params["prm"])
    return out_flat.reshape(n, lq, e)


# ---- pure-JAX reference (mirrors the PyTorch forward, f32 everywhere) -------
def reference(value, key, query, mask, raw):
    n, lq, e = query.shape
    H, D = HEADS, HEAD_DIM

    def per_head_proj(x, w):  # w: (D, D) pytorch (out, in); apply x @ w.T
        xr = x.reshape(n, -1, H, D)
        return jnp.einsum("nlhd,od->nlho", xr, w)

    Q = per_head_proj(query, raw["wq"])
    K = per_head_proj(key, raw["wk"])
    V = per_head_proj(value, raw["wv"])

    energy = jnp.einsum("nqhd,nkhd->nhqk", Q, K)
    energy = jnp.where(mask == 0, jnp.float32(-1e20), energy)
    attn = jax.nn.softmax(energy / (float(EMBED) ** 0.5), axis=3)
    out = jnp.einsum("nhqk,nkhd->nqhd", attn, V).reshape(n, lq, e)
    out = out @ raw["wo"].T + raw["bo"]

    def ln(x, g, b):
        mu = jnp.mean(x, -1, keepdims=True)
        var = jnp.mean((x - mu) ** 2, -1, keepdims=True)
        return (x - mu) / jnp.sqrt(var + EPS) * g + b

    x = ln(out + query, raw["g1"], raw["b1"])
    h1 = jax.nn.relu(x @ raw["w1"].T + raw["bf1"])
    ff = h1 @ raw["w2"].T + raw["bf2"]
    return ln(ff + x, raw["g2"], raw["b2"])


if __name__ == "__main__":
    key0 = jax.random.PRNGKey(0)
    ks = jax.random.split(key0, 16)

    # activations
    q = jax.random.normal(ks[0], (N, SEQ, EMBED), jnp.float32)
    k = jax.random.normal(ks[1], (N, SEQ, EMBED), jnp.float32)
    v = jax.random.normal(ks[2], (N, SEQ, EMBED), jnp.float32)
    # causal mask, broadcast to (N, H, Lq, Lk)
    mask = jnp.broadcast_to(
        jnp.tril(jnp.ones((SEQ, SEQ), jnp.float32)), (N, HEADS, SEQ, SEQ)
    )

    # deterministic parameters (PyTorch weight convention: (out, in))
    s = 0.1
    raw = {
        "wq": s * jax.random.normal(ks[3], (HEAD_DIM, HEAD_DIM), jnp.float32),
        "wk": s * jax.random.normal(ks[4], (HEAD_DIM, HEAD_DIM), jnp.float32),
        "wv": s * jax.random.normal(ks[5], (HEAD_DIM, HEAD_DIM), jnp.float32),
        "wo": s * jax.random.normal(ks[6], (EMBED, EMBED), jnp.float32),
        "bo": s * jax.random.normal(ks[7], (EMBED,), jnp.float32),
        "g1": 1.0 + s * jax.random.normal(ks[8], (EMBED,), jnp.float32),
        "b1": s * jax.random.normal(ks[9], (EMBED,), jnp.float32),
        "w1": s * jax.random.normal(ks[10], (HIDDEN, EMBED), jnp.float32),
        "bf1": s * jax.random.normal(ks[11], (HIDDEN,), jnp.float32),
        "w2": s * jax.random.normal(ks[12], (EMBED, HIDDEN), jnp.float32),
        "bf2": s * jax.random.normal(ks[13], (EMBED,), jnp.float32),
        "g2": 1.0 + s * jax.random.normal(ks[14], (EMBED,), jnp.float32),
        "b2": s * jax.random.normal(ks[15], (EMBED,), jnp.float32),
    }

    params = prepare_params(raw)        # one-time weight preprocessing
    out = transformer_block(v, k, q, mask, params)
    out = jax.block_until_ready(out)

    ref = reference(v, k, q, mask, raw)
    assert out.shape == (N, SEQ, EMBED)
    # tolerance 2e-2: matmul operands are bf16 (MXU-native) with f32
    # accumulation; expected error is O(5e-3), real bugs are O(1) errors.
    max_err = float(jnp.max(jnp.abs(out - ref)))
    assert jnp.allclose(out, ref, atol=2e-2, rtol=2e-2), max_err
    print("KERNEL_OK")
</pallas_src>

<mosaic_0001>
module attributes {stable_mosaic.version = 11 : i64} {
  func.func @transformer_block_kernel(%arg0: memref<64x24xf32, #tpu.memory_space<vmem>>, %arg1: memref<16x32xf32, #tpu.memory_space<vmem>>, %arg2: memref<8x8x8xf32, #tpu.memory_space<vmem>>, %arg3: memref<24x24xbf16, #tpu.memory_space<vmem>>, %arg4: memref<4x8x32xbf16, #tpu.memory_space<vmem>>, %arg5: memref<32x128xbf16, #tpu.memory_space<vmem>>, %arg6: memref<128x32xbf16, #tpu.memory_space<vmem>>, %arg7: memref<8x128xf32, #tpu.memory_space<vmem>>, %arg8: memref<16x32xf32, #tpu.memory_space<vmem>>) attributes {dimension_semantics = [], scalar_prefetch = 0 : i64, scratch_operands = 0 : i64, tpu.core_type = #tpu.core_type<tc>} {
    %c0 = arith.constant 0 : index
    %c0_0 = arith.constant 0 : index
    %0 = vector.load %arg7[%c0, %c0_0] : memref<8x128xf32, #tpu.memory_space<vmem>>, vector<8x128xf32>
    %1 = vector.extract_strided_slice %0 {offsets = [0, 0], sizes = [1, 32], strides = [1, 1]} : vector<8x128xf32> to vector<1x32xf32>
    %2 = vector.extract_strided_slice %0 {offsets = [1, 0], sizes = [1, 32], strides = [1, 1]} : vector<8x128xf32> to vector<1x32xf32>
    %3 = vector.extract_strided_slice %0 {offsets = [2, 0], sizes = [1, 32], strides = [1, 1]} : vector<8x128xf32> to vector<1x32xf32>
    %4 = vector.extract_strided_slice %0 {offsets = [3, 0], sizes = [1, 128], strides = [1, 1]} : vector<8x128xf32> to vector<1x128xf32>
    %5 = vector.extract_strided_slice %0 {offsets = [4, 0], sizes = [1, 32], strides = [1, 1]} : vector<8x128xf32> to vector<1x32xf32>
    %6 = vector.extract_strided_slice %0 {offsets = [5, 0], sizes = [1, 32], strides = [1, 1]} : vector<8x128xf32> to vector<1x32xf32>
    %7 = vector.extract_strided_slice %0 {offsets = [6, 0], sizes = [1, 32], strides = [1, 1]} : vector<8x128xf32> to vector<1x32xf32>
    %c0_1 = arith.constant 0 : index
    %c0_2 = arith.constant 0 : index
    %8 = vector.load %arg0[%c0_1, %c0_2] : memref<64x24xf32, #tpu.memory_space<vmem>>, vector<64x24xf32>
    %9 = arith.truncf %8 : vector<64x24xf32> to vector<64x24xbf16>
    %c0_3 = arith.constant 0 : index
    %c0_4 = arith.constant 0 : index
    %10 = vector.load %arg3[%c0_3, %c0_4] : memref<24x24xbf16, #tpu.memory_space<vmem>>, vector<24x24xbf16>
    %cst = arith.constant dense<0.000000e+00> : vector<64x24xf32>
    %11 = tpu.matmul %9, %10, %cst {dimension_numbers = #tpu.dot_dimension_numbers<[1], [0], [0], [1], [0, 0, 1, 1], [], []>} : vector<64x24xbf16>, vector<24x24xbf16>, vector<64x24xf32> -> vector<64x24xf32>
    %12 = vector.shape_cast %11 : vector<64x24xf32> to vector<8x8x24xf32>
    %13 = vector.extract_strided_slice %12 {offsets = [0, 0, 0], sizes = [8, 8, 8], strides = [1, 1, 1]} : vector<8x8x24xf32> to vector<8x8x8xf32>
    %14 = vector.extract_strided_slice %12 {offsets = [0, 0, 8], sizes = [8, 8, 8], strides = [1, 1, 1]} : vector<8x8x24xf32> to vector<8x8x8xf32>
    %15 = vector.extract_strided_slice %12 {offsets = [0, 0, 16], sizes = [8, 8, 8], strides = [1, 1, 1]} : vector<8x8x24xf32> to vector<8x8x8xf32>
    %16 = arith.truncf %13 : vector<8x8x8xf32> to vector<8x8x8xbf16>
    %17 = arith.truncf %14 : vector<8x8x8xf32> to vector<8x8x8xbf16>
    "tpu.trace_start"() <{level = 10 : i32, message = "bqd,bkd->bqk"}> : () -> ()
    %cst_5 = arith.constant dense<0.000000e+00> : vector<8x8x8xf32>
    %18 = tpu.matmul %16, %17, %cst_5 {dimension_numbers = #tpu.dot_dimension_numbers<[2], [2], [1], [1], [0, 0, 0, 1, 1, 1], [0], [0]>} : vector<8x8x8xbf16>, vector<8x8x8xbf16>, vector<8x8x8xf32> -> vector<8x8x8xf32>
    "tpu.trace_stop"() : () -> ()
    %c0_6 = arith.constant 0 : index
    %c0_7 = arith.constant 0 : index
    %c0_8 = arith.constant 0 : index
    %19 = vector.load %arg2[%c0_6, %c0_7, %c0_8] : memref<8x8x8xf32, #tpu.memory_space<vmem>>, vector<8x8x8xf32>
    %20 = arith.addf %18, %19 : vector<8x8x8xf32>
    %cst_9 = arith.constant dense<0xFF800000> : vector<8x8xf32>
    %21 = vector.multi_reduction <maximumf>, %20, %cst_9 [2] : vector<8x8x8xf32> to vector<8x8xf32>
    %22 = vector.shape_cast %21 : vector<8x8xf32> to vector<8x8x1xf32>
    %23 = vector.broadcast %22 : vector<8x8x1xf32> to vector<8x8x8xf32>
    %24 = arith.subf %20, %23 : vector<8x8x8xf32>
    %25 = math.exp %24 : vector<8x8x8xf32>
    %cst_10 = arith.constant dense<0.000000e+00> : vector<8x8xf32>
    %26 = vector.multi_reduction <add>, %25, %cst_10 [2] : vector<8x8x8xf32> to vector<8x8xf32>
    %27 = vector.shape_cast %26 : vector<8x8xf32> to vector<8x8x1xf32>
    %cst_11 = arith.constant 1.000000e-30 : f32
    %28 = vector.broadcast %cst_11 : f32 to vector<8x8x1xf32>
    %29 = arith.maximumf %27, %28 : vector<8x8x1xf32>
    %30 = tpu.reciprocal %29 {approx = true} : vector<8x8x1xf32> -> vector<8x8x1xf32>
    %31 = vector.broadcast %30 : vector<8x8x1xf32> to vector<8x8x8xf32>
    %32 = arith.mulf %25, %31 : vector<8x8x8xf32>
    %33 = arith.truncf %32 : vector<8x8x8xf32> to vector<8x8x8xbf16>
    %34 = arith.truncf %15 : vector<8x8x8xf32> to vector<8x8x8xbf16>
    "tpu.trace_start"() <{level = 10 : i32, message = "bqk,bkd->bqd"}> : () -> ()
    %cst_12 = arith.constant dense<0.000000e+00> : vector<8x8x8xf32>
    %35 = tpu.matmul %33, %34, %cst_12 {dimension_numbers = #tpu.dot_dimension_numbers<[2], [1], [1], [2], [0, 0, 0, 1, 1, 2], [0], [0]>} : vector<8x8x8xbf16>, vector<8x8x8xbf16>, vector<8x8x8xf32> -> vector<8x8x8xf32>
    "tpu.trace_stop"() : () -> ()
    %36 = vector.shape_cast %35 : vector<8x8x8xf32> to vector<4x16x8xf32>
    %37 = arith.truncf %36 : vector<4x16x8xf32> to vector<4x16x8xbf16>
    %c0_13 = arith.constant 0 : index
    %c0_14 = arith.constant 0 : index
    %c0_15 = arith.constant 0 : index
    %38 = vector.load %arg4[%c0_13, %c0_14, %c0_15] : memref<4x8x32xbf16, #tpu.memory_space<vmem>>, vector<4x8x32xbf16>
    "tpu.trace_start"() <{level = 10 : i32, message = "hmd,hde->hme"}> : () -> ()
    %cst_16 = arith.constant dense<0.000000e+00> : vector<4x16x32xf32>
    %39 = tpu.matmul %37, %38, %cst_16 {dimension_numbers = #tpu.dot_dimension_numbers<[2], [1], [1], [2], [0, 0, 0, 1, 1, 2], [0], [0]>} : vector<4x16x8xbf16>, vector<4x8x32xbf16>, vector<4x16x32xf32> -> vector<4x16x32xf32>
    "tpu.trace_stop"() : () -> ()
    %cst_17 = arith.constant dense<0.000000e+00> : vector<16x32xf32>
    %40 = vector.multi_reduction <add>, %39, %cst_17 [0] : vector<4x16x32xf32> to vector<16x32xf32>
    %41 = vector.broadcast %1 : vector<1x32xf32> to vector<16x32xf32>
    %42 = arith.addf %40, %41 : vector<16x32xf32>
    %c0_18 = arith.constant 0 : index
    %c0_19 = arith.constant 0 : index
    %43 = vector.load %arg1[%c0_18, %c0_19] : memref<16x32xf32, #tpu.memory_space<vmem>>, vector<16x32xf32>
    %44 = arith.addf %42, %43 : vector<16x32xf32>
    %cst_20 = arith.constant dense<0.000000e+00> : vector<16xf32>
    %45 = vector.multi_reduction <add>, %44, %cst_20 [1] : vector<16x32xf32> to vector<16xf32>
    %46 = vector.shape_cast %45 : vector<16xf32> to vector<16x1xf32>
    %cst_21 = arith.constant 3.200000e+01 : f32
    %47 = vector.broadcast %cst_21 : f32 to vector<16x1xf32>
    %48 = arith.divf %46, %47 : vector<16x1xf32>
    %49 = vector.broadcast %48 : vector<16x1xf32> to vector<16x32xf32>
    %50 = arith.subf %44, %49 : vector<16x32xf32>
    %51 = arith.mulf %50, %50 : vector<16x32xf32>
    %cst_22 = arith.constant dense<0.000000e+00> : vector<16xf32>
    %52 = vector.multi_reduction <add>, %51, %cst_22 [1] : vector<16x32xf32> to vector<16xf32>
    %53 = vector.shape_cast %52 : vector<16xf32> to vector<16x1xf32>
    %cst_23 = arith.constant 3.200000e+01 : f32
    %54 = vector.broadcast %cst_23 : f32 to vector<16x1xf32>
    %55 = arith.divf %53, %54 : vector<16x1xf32>
    %56 = vector.broadcast %48 : vector<16x1xf32> to vector<16x32xf32>
    %57 = arith.subf %44, %56 : vector<16x32xf32>
    %cst_24 = arith.constant 9.99999974E-6 : f32
    %58 = vector.broadcast %cst_24 : f32 to vector<16x1xf32>
    %59 = arith.addf %55, %58 : vector<16x1xf32>
    %60 = math.rsqrt %59 : vector<16x1xf32>
    %61 = vector.broadcast %60 : vector<16x1xf32> to vector<16x32xf32>
    %62 = arith.mulf %57, %61 : vector<16x32xf32>
    %63 = vector.broadcast %2 : vector<1x32xf32> to vector<16x32xf32>
    %64 = arith.mulf %62, %63 : vector<16x32xf32>
    %65 = vector.broadcast %3 : vector<1x32xf32> to vector<16x32xf32>
    %66 = arith.addf %64, %65 : vector<16x32xf32>
    %67 = arith.truncf %66 : vector<16x32xf32> to vector<16x32xbf16>
    %c0_25 = arith.constant 0 : index
    %c0_26 = arith.constant 0 : index
    %68 = vector.load %arg5[%c0_25, %c0_26] : memref<32x128xbf16, #tpu.memory_space<vmem>>, vector<32x128xbf16>
    %cst_27 = arith.constant dense<0.000000e+00> : vector<16x128xf32>
    %69 = tpu.matmul %67, %68, %cst_27 {dimension_numbers = #tpu.dot_dimension_numbers<[1], [0], [0], [1], [0, 0, 1, 1], [], []>} : vector<16x32xbf16>, vector<32x128xbf16>, vector<16x128xf32> -> vector<16x128xf32>
    %70 = vector.broadcast %4 : vector<1x128xf32> to vector<16x128xf32>
    %71 = arith.addf %69, %70 : vector<16x128xf32>
    %cst_28 = arith.constant 0.000000e+00 : f32
    %72 = vector.broadcast %cst_28 : f32 to vector<16x128xf32>
    %73 = arith.maximumf %71, %72 : vector<16x128xf32>
    %74 = arith.truncf %73 : vector<16x128xf32> to vector<16x128xbf16>
    %c0_29 = arith.constant 0 : index
    %c0_30 = arith.constant 0 : index
    %75 = vector.load %arg6[%c0_29, %c0_30] : memref<128x32xbf16, #tpu.memory_space<vmem>>, vector<128x32xbf16>
    %cst_31 = arith.constant dense<0.000000e+00> : vector<16x32xf32>
    %76 = tpu.matmul %74, %75, %cst_31 {dimension_numbers = #tpu.dot_dimension_numbers<[1], [0], [0], [1], [0, 0, 1, 1], [], []>} : vector<16x128xbf16>, vector<128x32xbf16>, vector<16x32xf32> -> vector<16x32xf32>
    %77 = vector.broadcast %5 : vector<1x32xf32> to vector<16x32xf32>
    %78 = arith.addf %76, %77 : vector<16x32xf32>
    %79 = arith.addf %78, %66 : vector<16x32xf32>
    %cst_32 = arith.constant dense<0.000000e+00> : vector<16xf32>
    %80 = vector.multi_reduction <add>, %79, %cst_32 [1] : vector<16x32xf32> to vector<16xf32>
    %81 = vector.shape_cast %80 : vector<16xf32> to vector<16x1xf32>
    %cst_33 = arith.constant 3.200000e+01 : f32
    %82 = vector.broadcast %cst_33 : f32 to vector<16x1xf32>
    %83 = arith.divf %81, %82 : vector<16x1xf32>
    %84 = vector.broadcast %83 : vector<16x1xf32> to vector<16x32xf32>
    %85 = arith.subf %79, %84 : vector<16x32xf32>
    %86 = arith.mulf %85, %85 : vector<16x32xf32>
    %cst_34 = arith.constant dense<0.000000e+00> : vector<16xf32>
    %87 = vector.multi_reduction <add>, %86, %cst_34 [1] : vector<16x32xf32> to vector<16xf32>
    %88 = vector.shape_cast %87 : vector<16xf32> to vector<16x1xf32>
    %cst_35 = arith.constant 3.200000e+01 : f32
    %89 = vector.broadcast %cst_35 : f32 to vector<16x1xf32>
    %90 = arith.divf %88, %89 : vector<16x1xf32>
    %91 = vector.broadcast %83 : vector<16x1xf32> to vector<16x32xf32>
    %92 = arith.subf %79, %91 : vector<16x32xf32>
    %cst_36 = arith.constant 9.99999974E-6 : f32
    %93 = vector.broadcast %cst_36 : f32 to vector<16x1xf32>
    %94 = arith.addf %90, %93 : vector<16x1xf32>
    %95 = math.rsqrt %94 : vector<16x1xf32>
    %96 = vector.broadcast %95 : vector<16x1xf32> to vector<16x32xf32>
    %97 = arith.mulf %92, %96 : vector<16x32xf32>
    %98 = vector.broadcast %6 : vector<1x32xf32> to vector<16x32xf32>
    %99 = arith.mulf %97, %98 : vector<16x32xf32>
    %100 = vector.broadcast %7 : vector<1x32xf32> to vector<16x32xf32>
    %101 = arith.addf %99, %100 : vector<16x32xf32>
    %c0_37 = arith.constant 0 : index
    %c0_38 = arith.constant 0 : index
    %102 = vector.load %arg8[%c0_37, %c0_38] : memref<16x32xf32, #tpu.memory_space<vmem>>, vector<16x32xf32>
    tpu.vector_store %arg8[%c0_37, %c0_38], %101 {strides = array<i32>} : memref<16x32xf32, #tpu.memory_space<vmem>>, vector<16x32xf32>,
    return
  }
}

</mosaic_0001>

<llo_original>
// kernel: transformer_block.1
$region0: #{transformer_block.1}
  #allocation0 [shape = 'u32[]', space=smem, size = 0x4, offset = 0x4, fixed_abs, tag = 'smem constant byte address 0x4 - core index']
  #allocation1 [shape = 'u32[144,128]{1,0:T(1,128)}', space=vmem, size = 0x12000, scoped, tag = 'internal scratch']
  %s0 = inlined_call_operand.vmem [shape: f32[64,24], index: 0, kind: input, shape index: {}]
  %s1 = inlined_call_operand.vmem [shape: f32[16,32], index: 1, kind: input, shape index: {}]
  %s2 = inlined_call_operand.vmem [shape: f32[8,8,8], index: 2, kind: input, shape index: {}]
  %s3 = inlined_call_operand.vmem [shape: bf16[24,24], index: 3, kind: input, shape index: {}]
  %s4 = inlined_call_operand.vmem [shape: bf16[4,8,32], index: 4, kind: input, shape index: {}]
  %s5 = inlined_call_operand.vmem [shape: bf16[32,128], index: 5, kind: input, shape index: {}]
  %s6 = inlined_call_operand.vmem [shape: bf16[128,32], index: 6, kind: input, shape index: {}]
  %s7 = inlined_call_operand.vmem [shape: f32[8,128], index: 7, kind: input, shape index: {}]
  %s8 = inlined_call_operand.hbm [shape: f32[16,32], index: 8, kind: output, shape index: {}]
  %s9 = sld [smem:[#allocation0]]
  $region42: #{transformer_block.1} parent=0
    _
  %s11 = ssub.s32 1, %s9
  %s12 = scalar_select 0, %s11, %s9
  $region1: #{transformer_block.1} parent=0
    #allocation2 [shape = 'u8[8192]{0}', space=vmem, size = 0x2000, scoped, tag = 'output window, operand 0, single buffered']
    #allocation3 [shape = 's32[1]{0}', space=sflag, size = 0x4, scoped, tag = 'scoped memory for transformer_block.1']
    %13 = vsyncpa [#allocation3], 0
    // Predicated region
    $region2: #{transformer_block.1} parent=1 // pred_check
      _
    $region3: #{transformer_block.1} parent=1 // pred_check_branch
      %15 = sbr.rel (0) target = $region5
    $region4: #{transformer_block.1} parent=1 // pred_region
      _
    $region5: #{transformer_block.1} parent=1 // pred_fallthru
      _
    // Predicated region
    $region6: #{transformer_block.1} parent=1 // pred_check
      _
    $region7: #{transformer_block.1} parent=1 // pred_check_branch
      %17 = sbr.rel (0) target = $region9
    $region8: #{transformer_block.1} parent=1 // pred_region
      _
    $region9: #{transformer_block.1} parent=1 // pred_fallthru
      _
    // Predicated region
    $region10: #{transformer_block.1} parent=1 // pred_check
      _
    $region11: #{transformer_block.1} parent=1 // pred_check_branch
      %19 = sbr.rel (0) target = $region13
    $region12: #{transformer_block.1} parent=1 // pred_region
      _
    $region13: #{transformer_block.1} parent=1 // pred_fallthru
      _
    // Predicated region
    $region14: #{transformer_block.1} parent=1 // pred_check
      _
    $region15: #{transformer_block.1} parent=1 // pred_check_branch
      %21 = sbr.rel (0) target = $region17
    $region16: #{transformer_block.1} parent=1 // pred_region
      _
    $region17: #{transformer_block.1} parent=1 // pred_fallthru
      _
    // Predicated region
    $region18: #{transformer_block.1} parent=1 // pred_check
      _
    $region19: #{transformer_block.1} parent=1 // pred_check_branch
      %23 = sbr.rel (0) target = $region21
    $region20: #{transformer_block.1} parent=1 // pred_region
      _
    $region21: #{transformer_block.1} parent=1 // pred_fallthru
      _
    // Predicated region
    $region22: #{transformer_block.1} parent=1 // pred_check
      _
    $region23: #{transformer_block.1} parent=1 // pred_check_branch
      %25 = sbr.rel (0) target = $region25
    $region24: #{transformer_block.1} parent=1 // pred_region
      _
    $region25: #{transformer_block.1} parent=1 // pred_fallthru
      _
    // Predicated region
    $region26: #{transformer_block.1} parent=1 // pred_check
      _
    $region27: #{transformer_block.1} parent=1 // pred_check_branch
      %27 = sbr.rel (0) target = $region29
    $region28: #{transformer_block.1} parent=1 // pred_region
      _
    $region29: #{transformer_block.1} parent=1 // pred_fallthru
      _
    // Predicated region
    $region30: #{transformer_block.1} parent=1 // pred_check
      _
    $region31: #{transformer_block.1} parent=1 // pred_check_branch
      %29 = sbr.rel (0) target = $region33
    $region32: #{transformer_block.1} parent=1 // pred_region
      _
    $region33: #{transformer_block.1} parent=1 // pred_fallthru
      _
    %v31 = vld [vmem:[%s7] sm:$0xff]
    %v32 = vld [vmem:[%s0] sm:$0xff]
    %v33 = vld [vmem:[%s0 + $0x8] sm:$0xff]
    %v34 = vld [vmem:[%s0 + $0x10] sm:$0xff]
    %v35 = vld [vmem:[%s0 + $0x18] sm:$0xff]
    %v36 = vld [vmem:[%s0 + $0x20] sm:$0xff]
    %v37 = vld [vmem:[%s0 + $0x28] sm:$0xff]
    %v38 = vld [vmem:[%s0 + $0x30] sm:$0xff]
    %v39 = vld [vmem:[%s0 + $0x38] sm:$0xff]
    %v40 = vpack.c.bf16 %v33, %v32
    %v41 = vpack.c.bf16 %v35, %v34
    %v42 = vpack.c.bf16 %v37, %v36
    %v43 = vpack.c.bf16 %v39, %v38
    %v44 = vld [vmem:[%s3] sm:$0xf]
    %v45 = vld [vmem:[%s3 + $0x4] sm:$0xf]
    %v46 = vld [vmem:[%s3 + $0x8] sm:$0xf]
    %v50 = vunpack.c.l.b16 %v44
    %v51 = vunpack.c.l.b16 %v45
    %v52 = vunpack.c.l.b16 %v46
    %v53 = vpack.c.b16 %v51, %v50
    %v54 = vpack.c.b16 %v52, %v52
    %vm56 = vcmask 195584
    %v58 = vsel %vm56, %v40, 0
    %v61 = vsel %vm56, %v41, 0
    %v64 = vsel %vm56, %v42, 0
    %v67 = vsel %vm56, %v43, 0
    %vm69 = vcmask 1043456
    %v71 = vsel %vm69, %v54, 0
    %73 = vmatprep.subr.bf16.mxu0 0
    %74 = vmatpush1.bf16.msra.mxu0 %v53
    %75 = vmatprep.subr.bf16.mxu0 0
    %76 = vmatpush1.bf16.msra.mxu0 %v71
    %77 = vmatprep.subr.bf16.mxu0 0
    %78 = vmatpush1.bf16.msra.mxu0 0
    %79 = vmatprep.subr.bf16.mxu0 0
    %80 = vmatpush1.bf16.msra.mxu0 0
    %81 = vmatprep.subr.bf16.mxu0 0
    %82 = vmatpush1.bf16.msra.mxu0 0
    %83 = vmatprep.subr.bf16.mxu0 0
    %84 = vmatpush1.bf16.msra.mxu0 0
    %85 = vmatprep.subr.bf16.mxu0 0
    %86 = vmatpush1.bf16.msra.mxu0 0
    %87 = vmatprep.subr.bf16.mxu0 0
    %88 = vmatpush1.bf16.msra.mxu0 0
    %89 = vmatprep.subr.bf16.mxu0 0
    %90 = vmatpush1.bf16.msra.mxu0 0
    %91 = vmatprep.subr.bf16.mxu0 0
    %92 = vmatpush1.bf16.msra.mxu0 0
    %93 = vmatprep.subr.bf16.mxu0 0
    %94 = vmatpush1.bf16.msra.mxu0 0
    %95 = vmatprep.subr.bf16.mxu0 0
    %96 = vmatpush1.bf16.msra.mxu0 0
    %97 = vmatprep.subr.bf16.mxu0 0
    %98 = vmatpush1.bf16.msra.mxu0 0
    %99 = vmatprep.subr.bf16.mxu0 0
    %100 = vmatpush1.bf16.msra.mxu0 0
    %101 = vmatprep.subr.bf16.mxu0 0
    %102 = vmatpush1.bf16.msra.mxu0 0
    %103 = vmatprep.subr.bf16.mxu0 0
    %104 = vmatpush1.bf16.msra.mxu0 0
    %105 = vmatprep.mubr.bf16.mxu0 0
    %106 = vmatmul.mubr.bf16.gmra.mrb[0].mxu0 %v58
    %v107 = vpop.f32.mrb[0].mxu0
    %v108 = vadd.f32 0.0, %v107
    %v109 = vpop.f32.mrb[0].mxu0
    %v110 = vpop.f32.mrb[0].mxu0
    %v111 = vadd.f32 0.0, %v110
    %v112 = vpop.f32.mrb[0].mxu0
    %113 = vmatprep.mubr.bf16.mxu0 0
    %114 = vmatmul.mubr.bf16.gmra.mrb[0].mxu0 %v61
    %v115 = vpop.f32.mrb[0].mxu0
    %v116 = vadd.f32 0.0, %v115
    %v117 = vpop.f32.mrb[0].mxu0
    %v118 = vpop.f32.mrb[0].mxu0
    %v119 = vadd.f32 0.0, %v118
    %v120 = vpop.f32.mrb[0].mxu0
    %121 = vmatprep.mubr.bf16.mxu0 0
    %122 = vmatmul.mubr.bf16.gmra.mrb[0].mxu0 %v64
    %v123 = vpop.f32.mrb[0].mxu0
    %v124 = vadd.f32 0.0, %v123
    %v125 = vpop.f32.mrb[0].mxu0
    %v126 = vpop.f32.mrb[0].mxu0
    %v127 = vadd.f32 0.0, %v126
    %v128 = vpop.f32.mrb[0].mxu0
    %129 = vmatprep.mubr.bf16.mxu0 0
    %130 = vmatmul.mubr.bf16.gmra.mrb[0].mxu0 %v67
    %v131 = vpop.f32.mrb[0].mxu0
    %v132 = vadd.f32 0.0, %v131
    %v133 = vpop.f32.mrb[0].mxu0
    %v134 = vpop.f32.mrb[0].mxu0
    %v135 = vadd.f32 0.0, %v134
    %v136 = vpop.f32.mrb[0].mxu0
    %137 = vdwg.mxu0
    %v138 = vpack.c.bf16 %v108, %v108
    %v139 = vpack.c.bf16 %v111, %v111
    %v140 = vpack.c.bf16 %v116, %v116
    %v141 = vpack.c.bf16 %v119, %v119
    %v142 = vpack.c.bf16 %v124, %v124
    %v143 = vpack.c.bf16 %v127, %v127
    %v144 = vpack.c.bf16 %v132, %v132
    %v145 = vpack.c.bf16 %v135, %v135
    %v146 = vld [vmem:[%s2] sm:$0xff]
    %v147 = vld [vmem:[%s2 + $0x8] sm:$0xff]
    %v148 = vld [vmem:[%s2 + $0x10] sm:$0xff]
    %v149 = vld [vmem:[%s2 + $0x18] sm:$0xff]
    %v150 = vld [vmem:[%s2 + $0x20] sm:$0xff]
    %v151 = vld [vmem:[%s2 + $0x28] sm:$0xff]
    %v152 = vld [vmem:[%s2 + $0x30] sm:$0xff]
    %v153 = vld [vmem:[%s2 + $0x38] sm:$0xff]
    %155 = vrot.lane.b32.xlu0 %v138, 120
    %v156 = vpop.permute.xlu0 %155
    %vm157 = vcmask 64512
    %v159 = vsel %vm157, %v138, 0
    %v162 = vsel %vm157, %v156, 0
    %164 = vmatprep.subr.bf16.mxu0 0
    %165 = vmatpush1.bf16.xpose.msra.mxu0 %v162
    %166 = vmatprep.subr.bf16.mxu0 0
    %167 = vmatpush1.bf16.xpose.msra.mxu0 0
    %168 = vmatprep.subr.bf16.mxu0 0
    %169 = vmatpush1.bf16.xpose.msra.mxu0 0
    %170 = vmatprep.subr.bf16.mxu0 0
    %171 = vmatpush1.bf16.xpose.msra.mxu0 0
    %172 = vmatprep.subr.bf16.mxu0 0
    %173 = vmatpush1.bf16.xpose.msra.mxu0 0
    %174 = vmatprep.subr.bf16.mxu0 0
    %175 = vmatpush1.bf16.xpose.msra.mxu0 0
    %176 = vmatprep.subr.bf16.mxu0 0
    %177 = vmatpush1.bf16.xpose.msra.mxu0 0
    %178 = vmatprep.subr.bf16.mxu0 0
    %179 = vmatpush1.bf16.xpose.msra.mxu0 0
    %180 = vmatprep.subr.bf16.mxu0 0
    %181 = vmatpush1.bf16.xpose.msra.mxu0 0
    %182 = vmatprep.subr.bf16.mxu0 0
    %183 = vmatpush1.bf16.xpose.msra.mxu0 0
    %184 = vmatprep.subr.bf16.mxu0 0
    %185 = vmatpush1.bf16.xpose.msra.mxu0 0
    %186 = vmatprep.subr.bf16.mxu0 0
    %187 = vmatpush1.bf16.xpose.msra.mxu0 0
    %188 = vmatprep.subr.bf16.mxu0 0
    %189 = vmatpush1.bf16.xpose.msra.mxu0 0
    %190 = vmatprep.subr.bf16.mxu0 0
    %191 = vmatpush1.bf16.xpose.msra.mxu0 0
    %192 = vmatprep.subr.bf16.mxu0 0
    %193 = vmatpush1.bf16.xpose.msra.mxu0 0
    %194 = vmatprep.subr.bf16.mxu0 0
    %195 = vmatpush1.bf16.xpose.msra.mxu0 0
    %196 = vmatprep.mubr.bf16.mxu0 0
    %197 = vmatmul.mubr.bf16.gmra.mrb[0].mxu0 %v159
    %v198 = vpop.f32.mrb[0].mxu0
    %v199 = vadd.f32 %v146, %v198
    %v200 = vpop.f32.mrb[0].mxu0
    %v201 = vpop.f32.mrb[0].mxu0
    %v202 = vpop.f32.mrb[0].mxu0
    %203 = vdwg.mxu0
    %205 = vrot.lane.b32.xlu0 %v139, 120
    %v206 = vpop.permute.xlu0 %205
    %v208 = vsel %vm157, %v139, 0
    %v211 = vsel %vm157, %v206, 0
    %213 = vmatprep.subr.bf16.mxu0 0
    %214 = vmatpush1.bf16.xpose.msra.mxu0 %v211
    %215 = vmatprep.subr.bf16.mxu0 0
    %216 = vmatpush1.bf16.xpose.msra.mxu0 0
    %217 = vmatprep.subr.bf16.mxu0 0
    %218 = vmatpush1.bf16.xpose.msra.mxu0 0
    %219 = vmatprep.subr.bf16.mxu0 0
    %220 = vmatpush1.bf16.xpose.msra.mxu0 0
    %221 = vmatprep.subr.bf16.mxu0 0
    %222 = vmatpush1.bf16.xpose.msra.mxu0 0
    %223 = vmatprep.subr.bf16.mxu0 0
    %224 = vmatpush1.bf16.xpose.msra.mxu0 0
    %225 = vmatprep.subr.bf16.mxu0 0
    %226 = vmatpush1.bf16.xpose.msra.mxu0 0
    %227 = vmatprep.subr.bf16.mxu0 0
    %228 = vmatpush1.bf16.xpose.msra.mxu0 0
    %229 = vmatprep.subr.bf16.mxu0 0
    %230 = vmatpush1.bf16.xpose.msra.mxu0 0
    %231 = vmatprep.subr.bf16.mxu0 0
    %232 = vmatpush1.bf16.xpose.msra.mxu0 0
    %233 = vmatprep.subr.bf16.mxu0 0
    %234 = vmatpush1.bf16.xpose.msra.mxu0 0
    %235 = vmatprep.subr.bf16.mxu0 0
    %236 = vmatpush1.bf16.xpose.msra.mxu0 0
    %237 = vmatprep.subr.bf16.mxu0 0
    %238 = vmatpush1.bf16.xpose.msra.mxu0 0
    %239 = vmatprep.subr.bf16.mxu0 0
    %240 = vmatpush1.bf16.xpose.msra.mxu0 0
    %241 = vmatprep.subr.bf16.mxu0 0
    %242 = vmatpush1.bf16.xpose.msra.mxu0 0
    %243 = vmatprep.subr.bf16.mxu0 0
    %244 = vmatpush1.bf16.xpose.msra.mxu0 0
    %245 = vmatprep.mubr.bf16.mxu0 0
    %246 = vmatmul.mubr.bf16.gmra.mrb[0].mxu0 %v208
    %v247 = vpop.f32.mrb[0].mxu0
    %v248 = vadd.f32 %v147, %v247
    %v249 = vpop.f32.mrb[0].mxu0
    %v250 = vpop.f32.mrb[0].mxu0
    %v251 = vpop.f32.mrb[0].mxu0
    %252 = vdwg.mxu0
    %254 = vrot.lane.b32.xlu0 %v140, 120
    %v255 = vpop.permute.xlu0 %254
    %v257 = vsel %vm157, %v140, 0
    %v260 = vsel %vm157, %v255, 0
    %262 = vmatprep.subr.bf16.mxu0 0
    %263 = vmatpush1.bf16.xpose.msra.mxu0 %v260
    %264 = vmatprep.subr.bf16.mxu0 0
    %265 = vmatpush1.bf16.xpose.msra.mxu0 0
    %266 = vmatprep.subr.bf16.mxu0 0
    %267 = vmatpush1.bf16.xpose.msra.mxu0 0
    %268 = vmatprep.subr.bf16.mxu0 0
    %269 = vmatpush1.bf16.xpose.msra.mxu0 0
    %270 = vmatprep.subr.bf16.mxu0 0
    %271 = vmatpush1.bf16.xpose.msra.mxu0 0
    %272 = vmatprep.subr.bf16.mxu0 0
    %273 = vmatpush1.bf16.xpose.msra.mxu0 0
    %274 = vmatprep.subr.bf16.mxu0 0
    %275 = vmatpush1.bf16.xpose.msra.mxu0 0
    %276 = vmatprep.subr.bf16.mxu0 0
    %277 = vmatpush1.bf16.xpose.msra.mxu0 0
    %278 = vmatprep.subr.bf16.mxu0 0
    %279 = vmatpush1.bf16.xpose.msra.mxu0 0
    %280 = vmatprep.subr.bf16.mxu0 0
    %281 = vmatpush1.bf16.xpose.msra.mxu0 0
    %282 = vmatprep.subr.bf16.mxu0 0
    %283 = vmatpush1.bf16.xpose.msra.mxu0 0
    %284 = vmatprep.subr.bf16.mxu0 0
    %285 = vmatpush1.bf16.xpose.msra.mxu0 0
    %286 = vmatprep.subr.bf16.mxu0 0
    %287 = vmatpush1.bf16.xpose.msra.mxu0 0
    %288 = vmatprep.subr.bf16.mxu0 0
    %289 = vmatpush1.bf16.xpose.msra.mxu0 0
    %290 = vmatprep.subr.bf16.mxu0 0
    %291 = vmatpush1.bf16.xpose.msra.mxu0 0
    %292 = vmatprep.subr.bf16.mxu0 0
    %293 = vmatpush1.bf16.xpose.msra.mxu0 0
    %294 = vmatprep.mubr.bf16.mxu0 0
    %295 = vmatmul.mubr.bf16.gmra.mrb[0].mxu0 %v257
    %v296 = vpop.f32.mrb[0].mxu0
    %v297 = vadd.f32 %v148, %v296
    %v298 = vpop.f32.mrb[0].mxu0
    %v299 = vpop.f32.mrb[0].mxu0
    %v300 = vpop.f32.mrb[0].mxu0
    %301 = vdwg.mxu0
    %303 = vrot.lane.b32.xlu0 %v141, 120
    %v304 = vpop.permute.xlu0 %303
    %v306 = vsel %vm157, %v141, 0
    %v309 = vsel %vm157, %v304, 0
    %311 = vmatprep.subr.bf16.mxu0 0
    %312 = vmatpush1.bf16.xpose.msra.mxu0 %v309
    %313 = vmatprep.subr.bf16.mxu0 0
    %314 = vmatpush1.bf16.xpose.msra.mxu0 0
    %315 = vmatprep.subr.bf16.mxu0 0
    %316 = vmatpush1.bf16.xpose.msra.mxu0 0
    %317 = vmatprep.subr.bf16.mxu0 0
    %318 = vmatpush1.bf16.xpose.msra.mxu0 0
    %319 = vmatprep.subr.bf16.mxu0 0
    %320 = vmatpush1.bf16.xpose.msra.mxu0 0
    %321 = vmatprep.subr.bf16.mxu0 0
    %322 = vmatpush1.bf16.xpose.msra.mxu0 0
    %323 = vmatprep.subr.bf16.mxu0 0
    %324 = vmatpush1.bf16.xpose.msra.mxu0 0
    %325 = vmatprep.subr.bf16.mxu0 0
    %326 = vmatpush1.bf16.xpose.msra.mxu0 0
    %327 = vmatprep.subr.bf16.mxu0 0
    %328 = vmatpush1.bf16.xpose.msra.mxu0 0
    %329 = vmatprep.subr.bf16.mxu0 0
    %330 = vmatpush1.bf16.xpose.msra.mxu0 0
    %331 = vmatprep.subr.bf16.mxu0 0
    %332 = vmatpush1.bf16.xpose.msra.mxu0 0
    %333 = vmatprep.subr.bf16.mxu0 0
    %334 = vmatpush1.bf16.xpose.msra.mxu0 0
    %335 = vmatprep.subr.bf16.mxu0 0
    %336 = vmatpush1.bf16.xpose.msra.mxu0 0
    %337 = vmatprep.subr.bf16.mxu0 0
    %338 = vmatpush1.bf16.xpose.msra.mxu0 0
    %339 = vmatprep.subr.bf16.mxu0 0
    %340 = vmatpush1.bf16.xpose.msra.mxu0 0
    %341 = vmatprep.subr.bf16.mxu0 0
    %342 = vmatpush1.bf16.xpose.msra.mxu0 0
    %343 = vmatprep.mubr.bf16.mxu0 0
    %344 = vmatmul.mubr.bf16.gmra.mrb[0].mxu0 %v306
    %v345 = vpop.f32.mrb[0].mxu0
    %v346 = vadd.f32 %v149, %v345
    %v347 = vpop.f32.mrb[0].mxu0
    %v348 = vpop.f32.mrb[0].mxu0
    %v349 = vpop.f32.mrb[0].mxu0
    %350 = vdwg.mxu0
    %352 = vrot.lane.b32.xlu0 %v142, 120
    %v353 = vpop.permute.xlu0 %352
    %v355 = vsel %vm157, %v142, 0
    %v358 = vsel %vm157, %v353, 0
    %360 = vmatprep.subr.bf16.mxu0 0
    %361 = vmatpush1.bf16.xpose.msra.mxu0 %v358
    %362 = vmatprep.subr.bf16.mxu0 0
    %363 = vmatpush1.bf16.xpose.msra.mxu0 0
    %364 = vmatprep.subr.bf16.mxu0 0
    %365 = vmatpush1.bf16.xpose.msra.mxu0 0
    %366 = vmatprep.subr.bf16.mxu0 0
    %367 = vmatpush1.bf16.xpose.msra.mxu0 0
    %368 = vmatprep.subr.bf16.mxu0 0
    %369 = vmatpush1.bf16.xpose.msra.mxu0 0
    %370 = vmatprep.subr.bf16.mxu0 0
    %371 = vmatpush1.bf16.xpose.msra.mxu0 0
    %372 = vmatprep.subr.bf16.mxu0 0
    %373 = vmatpush1.bf16.xpose.msra.mxu0 0
    %374 = vmatprep.subr.bf16.mxu0 0
    %375 = vmatpush1.bf16.xpose.msra.mxu0 0
    %376 = vmatprep.subr.bf16.mxu0 0
    %377 = vmatpush1.bf16.xpose.msra.mxu0 0
    %378 = vmatprep.subr.bf16.mxu0 0
    %379 = vmatpush1.bf16.xpose.msra.mxu0 0
    %380 = vmatprep.subr.bf16.mxu0 0
    %381 = vmatpush1.bf16.xpose.msra.mxu0 0
    %382 = vmatprep.subr.bf16.mxu0 0
    %383 = vmatpush1.bf16.xpose.msra.mxu0 0
    %384 = vmatprep.subr.bf16.mxu0 0
    %385 = vmatpush1.bf16.xpose.msra.mxu0 0
    %386 = vmatprep.subr.bf16.mxu0 0
    %387 = vmatpush1.bf16.xpose.msra.mxu0 0
    %388 = vmatprep.subr.bf16.mxu0 0
    %389 = vmatpush1.bf16.xpose.msra.mxu0 0
    %390 = vmatprep.subr.bf16.mxu0 0
    %391 = vmatpush1.bf16.xpose.msra.mxu0 0
    %392 = vmatprep.mubr.bf16.mxu0 0
    %393 = vmatmul.mubr.bf16.gmra.mrb[0].mxu0 %v355
    %v394 = vpop.f32.mrb[0].mxu0
    %v395 = vadd.f32 %v150, %v394
    %v396 = vpop.f32.mrb[0].mxu0
    %v397 = vpop.f32.mrb[0].mxu0
    %v398 = vpop.f32.mrb[0].mxu0
    %399 = vdwg.mxu0
    %401 = vrot.lane.b32.xlu0 %v143, 120
    %v402 = vpop.permute.xlu0 %401
    %v404 = vsel %vm157, %v143, 0
    %v407 = vsel %vm157, %v402, 0
    %409 = vmatprep.subr.bf16.mxu0 0
    %410 = vmatpush1.bf16.xpose.msra.mxu0 %v407
    %411 = vmatprep.subr.bf16.mxu0 0
    %412 = vmatpush1.bf16.xpose.msra.mxu0 0
    %413 = vmatprep.subr.bf16.mxu0 0
    %414 = vmatpush1.bf16.xpose.msra.mxu0 0
    %415 = vmatprep.subr.bf16.mxu0 0
    %416 = vmatpush1.bf16.xpose.msra.mxu0 0
    %417 = vmatprep.subr.bf16.mxu0 0
    %418 = vmatpush1.bf16.xpose.msra.mxu0 0
    %419 = vmatprep.subr.bf16.mxu0 0
    %420 = vmatpush1.bf16.xpose.msra.mxu0 0
    %421 = vmatprep.subr.bf16.mxu0 0
    %422 = vmatpush1.bf16.xpose.msra.mxu0 0
    %423 = vmatprep.subr.bf16.mxu0 0
    %424 = vmatpush1.bf16.xpose.msra.mxu0 0
    %425 = vmatprep.subr.bf16.mxu0 0
    %426 = vmatpush1.bf16.xpose.msra.mxu0 0
    %427 = vmatprep.subr.bf16.mxu0 0
    %428 = vmatpush1.bf16.xpose.msra.mxu0 0
    %429 = vmatprep.subr.bf16.mxu0 0
    %430 = vmatpush1.bf16.xpose.msra.mxu0 0
    %431 = vmatprep.subr.bf16.mxu0 0
    %432 = vmatpush1.bf16.xpose.msra.mxu0 0
    %433 = vmatprep.subr.bf16.mxu0 0
    %434 = vmatpush1.bf16.xpose.msra.mxu0 0
    %435 = vmatprep.subr.bf16.mxu0 0
    %436 = vmatpush1.bf16.xpose.msra.mxu0 0
    %437 = vmatprep.subr.bf16.mxu0 0
    %438 = vmatpush1.bf16.xpose.msra.mxu0 0
    %439 = vmatprep.subr.bf16.mxu0 0
    %440 = vmatpush1.bf16.xpose.msra.mxu0 0
    %441 = vmatprep.mubr.bf16.mxu0 0
    %442 = vmatmul.mubr.bf16.gmra.mrb[0].mxu0 %v404
    %v443 = vpop.f32.mrb[0].mxu0
    %v444 = vadd.f32 %v151, %v443
    %v445 = vpop.f32.mrb[0].mxu0
    %v446 = vpop.f32.mrb[0].mxu0
    %v447 = vpop.f32.mrb[0].mxu0
    %448 = vdwg.mxu0
    %450 = vrot.lane.b32.xlu0 %v144, 120
    %v451 = vpop.permute.xlu0 %450
    %v453 = vsel %vm157, %v144, 0
    %v456 = vsel %vm157, %v451, 0
    %458 = vmatprep.subr.bf16.mxu0 0
    %459 = vmatpush1.bf16.xpose.msra.mxu0 %v456
    %460 = vmatprep.subr.bf16.mxu0 0
    %461 = vmatpush1.bf16.xpose.msra.mxu0 0
    %462 = vmatprep.subr.bf16.mxu0 0
    %463 = vmatpush1.bf16.xpose.msra.mxu0 0
    %464 = vmatprep.subr.bf16.mxu0 0
    %465 = vmatpush1.bf16.xpose.msra.mxu0 0
    %466 = vmatprep.subr.bf16.mxu0 0
    %467 = vmatpush1.bf16.xpose.msra.mxu0 0
    %468 = vmatprep.subr.bf16.mxu0 0
    %469 = vmatpush1.bf16.xpose.msra.mxu0 0
    %470 = vmatprep.subr.bf16.mxu0 0
    %471 = vmatpush1.bf16.xpose.msra.mxu0 0
    %472 = vmatprep.subr.bf16.mxu0 0
    %473 = vmatpush1.bf16.xpose.msra.mxu0 0
    %474 = vmatprep.subr.bf16.mxu0 0
    %475 = vmatpush1.bf16.xpose.msra.mxu0 0
    %476 = vmatprep.subr.bf16.mxu0 0
    %477 = vmatpush1.bf16.xpose.msra.mxu0 0
    %478 = vmatprep.subr.bf16.mxu0 0
    %479 = vmatpush1.bf16.xpose.msra.mxu0 0
    %480 = vmatprep.subr.bf16.mxu0 0
    %481 = vmatpush1.bf16.xpose.msra.mxu0 0
    %482 = vmatprep.subr.bf16.mxu0 0
    %483 = vmatpush1.bf16.xpose.msra.mxu0 0
    %484 = vmatprep.subr.bf16.mxu0 0
    %485 = vmatpush1.bf16.xpose.msra.mxu0 0
    %486 = vmatprep.subr.bf16.mxu0 0
    %487 = vmatpush1.bf16.xpose.msra.mxu0 0
    %488 = vmatprep.subr.bf16.mxu0 0
    %489 = vmatpush1.bf16.xpose.msra.mxu0 0
    %490 = vmatprep.mubr.bf16.mxu0 0
    %491 = vmatmul.mubr.bf16.gmra.mrb[0].mxu0 %v453
    %v492 = vpop.f32.mrb[0].mxu0
    %v493 = vadd.f32 %v152, %v492
    %v494 = vpop.f32.mrb[0].mxu0
    %v495 = vpop.f32.mrb[0].mxu0
    %v496 = vpop.f32.mrb[0].mxu0
    %497 = vdwg.mxu0
    %499 = vrot.lane.b32.xlu0 %v145, 120
    %v500 = vpop.permute.xlu0 %499
    %v502 = vsel %vm157, %v145, 0
    %v505 = vsel %vm157, %v500, 0
    %507 = vmatprep.subr.bf16.mxu0 0
    %508 = vmatpush1.bf16.xpose.msra.mxu0 %v505
    %509 = vmatprep.subr.bf16.mxu0 0
    %510 = vmatpush1.bf16.xpose.msra.mxu0 0
    %511 = vmatprep.subr.bf16.mxu0 0
    %512 = vmatpush1.bf16.xpose.msra.mxu0 0
    %513 = vmatprep.subr.bf16.mxu0 0
    %514 = vmatpush1.bf16.xpose.msra.mxu0 0
    %515 = vmatprep.subr.bf16.mxu0 0
    %516 = vmatpush1.bf16.xpose.msra.mxu0 0
    %517 = vmatprep.subr.bf16.mxu0 0
    %518 = vmatpush1.bf16.xpose.msra.mxu0 0
    %519 = vmatprep.subr.bf16.mxu0 0
    %520 = vmatpush1.bf16.xpose.msra.mxu0 0
    %521 = vmatprep.subr.bf16.mxu0 0
    %522 = vmatpush1.bf16.xpose.msra.mxu0 0
    %523 = vmatprep.subr.bf16.mxu0 0
    %524 = vmatpush1.bf16.xpose.msra.mxu0 0
    %525 = vmatprep.subr.bf16.mxu0 0
    %526 = vmatpush1.bf16.xpose.msra.mxu0 0
    %527 = vmatprep.subr.bf16.mxu0 0
    %528 = vmatpush1.bf16.xpose.msra.mxu0 0
    %529 = vmatprep.subr.bf16.mxu0 0
    %530 = vmatpush1.bf16.xpose.msra.mxu0 0
    %531 = vmatprep.subr.bf16.mxu0 0
    %532 = vmatpush1.bf16.xpose.msra.mxu0 0
    %533 = vmatprep.subr.bf16.mxu0 0
    %534 = vmatpush1.bf16.xpose.msra.mxu0 0
    %535 = vmatprep.subr.bf16.mxu0 0
    %536 = vmatpush1.bf16.xpose.msra.mxu0 0
    %537 = vmatprep.subr.bf16.mxu0 0
    %538 = vmatpush1.bf16.xpose.msra.mxu0 0
    %539 = vmatprep.mubr.bf16.mxu0 0
    %540 = vmatmul.mubr.bf16.gmra.mrb[0].mxu0 %v502
    %v541 = vpop.f32.mrb[0].mxu0
    %v542 = vadd.f32 %v153, %v541
    %v543 = vpop.f32.mrb[0].mxu0
    %v544 = vpop.f32.mrb[0].mxu0
    %v545 = vpop.f32.mrb[0].mxu0
    %546 = vdwg.mxu0
    %v547 = vsel %vm157, %v199, -inf
    %548 = vmax.xlane.f32.xlu0 %v547
    %v549 = vpop.xlane.xlu0 %548
    %v550 = vsel %vm157, %v248, -inf
    %551 = vmax.xlane.f32.xlu0 %v550
    %v552 = vpop.xlane.xlu0 %551
    %v553 = vsel %vm157, %v297, -inf
    %554 = vmax.xlane.f32.xlu0 %v553
    %v555 = vpop.xlane.xlu0 %554
    %v556 = vsel %vm157, %v346, -inf
    %557 = vmax.xlane.f32.xlu0 %v556
    %v558 = vpop.xlane.xlu0 %557
    %v559 = vsel %vm157, %v395, -inf
    %560 = vmax.xlane.f32.xlu0 %v559
    %v561 = vpop.xlane.xlu0 %560
    %v562 = vsel %vm157, %v444, -inf
    %563 = vmax.xlane.f32.xlu0 %v562
    %v564 = vpop.xlane.xlu0 %563
    %v565 = vsel %vm157, %v493, -inf
    %566 = vmax.xlane.f32.xlu0 %v565
    %v567 = vpop.xlane.xlu0 %566
    %v568 = vsel %vm157, %v542, -inf
    %569 = vmax.xlane.f32.xlu0 %v568
    %v570 = vpop.xlane.xlu0 %569
    %v571 = vsub.f32 %v199, %v549
    %v572 = vsub.f32 %v248, %v552
    %v573 = vsub.f32 %v297, %v555
    %v574 = vsub.f32 %v346, %v558
    %v575 = vsub.f32 %v395, %v561
    %v576 = vsub.f32 %v444, %v564
    %v577 = vsub.f32 %v493, %v567
    %v578 = vsub.f32 %v542, %v570
    %v579 = vmul.f32 %v571, 1.442695
    %v580 = vpow.pop %v579
    %v581 = vmul.f32 %v572, 1.442695
    %v582 = vpow.pop %v581
    %v583 = vmul.f32 %v573, 1.442695
    %v584 = vpow.pop %v583
    %v585 = vmul.f32 %v574, 1.442695
    %v586 = vpow.pop %v585
    %v587 = vmul.f32 %v575, 1.442695
    %v588 = vpow.pop %v587
    %v589 = vmul.f32 %v576, 1.442695
    %v590 = vpow.pop %v589
    %v591 = vmul.f32 %v577, 1.442695
    %v592 = vpow.pop %v591
    %v593 = vmul.f32 %v578, 1.442695
    %v594 = vpow.pop %v593
    %v595 = vsel %vm157, %v580, 0.0
    %596 = vadd.xlane.f32.xlu0 %v595
    %v597 = vpop.xlane.xlu0 %596
    %v598 = vsel %vm157, %v582, 0.0
    %599 = vadd.xlane.f32.xlu0 %v598
    %v600 = vpop.xlane.xlu0 %599
    %v601 = vsel %vm157, %v584, 0.0
    %602 = vadd.xlane.f32.xlu0 %v601
    %v603 = vpop.xlane.xlu0 %602
    %v604 = vsel %vm157, %v586, 0.0
    %605 = vadd.xlane.f32.xlu0 %v604
    %v606 = vpop.xlane.xlu0 %605
    %v607 = vsel %vm157, %v588, 0.0
    %608 = vadd.xlane.f32.xlu0 %v607
    %v609 = vpop.xlane.xlu0 %608
    %v610 = vsel %vm157, %v590, 0.0
    %611 = vadd.xlane.f32.xlu0 %v610
    %v612 = vpop.xlane.xlu0 %611
    %v613 = vsel %vm157, %v592, 0.0
    %614 = vadd.xlane.f32.xlu0 %v613
    %v615 = vpop.xlane.xlu0 %614
    %v616 = vsel %vm157, %v594, 0.0
    %617 = vadd.xlane.f32.xlu0 %v616
    %v618 = vpop.xlane.xlu0 %617
    %v619 = vmax.f32 %v597, 1e-30
    %v620 = vmax.f32 %v600, 1e-30
    %v621 = vmax.f32 %v603, 1e-30
    %v622 = vmax.f32 %v606, 1e-30
    %v623 = vmax.f32 %v609, 1e-30
    %v624 = vmax.f32 %v612, 1e-30
    %v625 = vmax.f32 %v615, 1e-30
    %v626 = vmax.f32 %v618, 1e-30
    %v627 = vrcp.pop %v619
    %v628 = vrcp.pop %v620
    %v629 = vrcp.pop %v621
    %v630 = vrcp.pop %v622
    %v631 = vrcp.pop %v623
    %v632 = vrcp.pop %v624
    %v633 = vrcp.pop %v625
    %v634 = vrcp.pop %v626
    %v635 = vmul.f32 %v580, %v627
    %v636 = vmul.f32 %v582, %v628
    %v637 = vmul.f32 %v584, %v629
    %v638 = vmul.f32 %v586, %v630
    %v639 = vmul.f32 %v588, %v631
    %v640 = vmul.f32 %v590, %v632
    %v641 = vmul.f32 %v592, %v633
    %v642 = vmul.f32 %v594, %v634
    %v643 = vpack.c.bf16 %v635, %v635
    %v644 = vpack.c.bf16 %v636, %v636
    %v645 = vpack.c.bf16 %v637, %v637
    %v646 = vpack.c.bf16 %v638, %v638
    %v647 = vpack.c.bf16 %v639, %v639
    %v648 = vpack.c.bf16 %v640, %v640
    %v649 = vpack.c.bf16 %v641, %v641
    %v650 = vpack.c.bf16 %v642, %v642
    %651 = vrot.lane.b32.xlu0 %v138, 112
    %v652 = vpop.permute.xlu0 %651
    %v654 = vsel %vm157, %v643, 0
    %v657 = vsel %vm69, %v652, 0
    %659 = vmatprep.subr.bf16.mxu0 0
    %660 = vmatpush1.bf16.msra.mxu0 %v657
    %661 = vmatprep.subr.bf16.mxu0 0
    %662 = vmatpush1.bf16.msra.mxu0 0
    %663 = vmatprep.subr.bf16.mxu0 0
    %664 = vmatpush1.bf16.msra.mxu0 0
    %665 = vmatprep.subr.bf16.mxu0 0
    %666 = vmatpush1.bf16.msra.mxu0 0
    %667 = vmatprep.subr.bf16.mxu0 0
    %668 = vmatpush1.bf16.msra.mxu0 0
    %669 = vmatprep.subr.bf16.mxu0 0
    %670 = vmatpush1.bf16.msra.mxu0 0
    %671 = vmatprep.subr.bf16.mxu0 0
    %672 = vmatpush1.bf16.msra.mxu0 0
    %673 = vmatprep.subr.bf16.mxu0 0
    %674 = vmatpush1.bf16.msra.mxu0 0
    %675 = vmatprep.subr.bf16.mxu0 0
    %676 = vmatpush1.bf16.msra.mxu0 0
    %677 = vmatprep.subr.bf16.mxu0 0
    %678 = vmatpush1.bf16.msra.mxu0 0
    %679 = vmatprep.subr.bf16.mxu0 0
    %680 = vmatpush1.bf16.msra.mxu0 0
    %681 = vmatprep.subr.bf16.mxu0 0
    %682 = vmatpush1.bf16.msra.mxu0 0
    %683 = vmatprep.subr.bf16.mxu0 0
    %684 = vmatpush1.bf16.msra.mxu0 0
    %685 = vmatprep.subr.bf16.mxu0 0
    %686 = vmatpush1.bf16.msra.mxu0 0
    %687 = vmatprep.subr.bf16.mxu0 0
    %688 = vmatpush1.bf16.msra.mxu0 0
    %689 = vmatprep.subr.bf16.mxu0 0
    %690 = vmatpush1.bf16.msra.mxu0 0
    %691 = vmatprep.mubr.bf16.mxu0 0
    %692 = vmatmul.mubr.bf16.gmra.mrb[0].mxu0 %v654
    %v693 = vpop.f32.mrb[0].mxu0
    %v694 = vadd.f32 0.0, %v693
    %v695 = vpop.f32.mrb[0].mxu0
    %v696 = vpop.f32.mrb[0].mxu0
    %v697 = vpop.f32.mrb[0].mxu0
    %698 = vdwg.mxu0
    %699 = vrot.lane.b32.xlu0 %v139, 112
    %v700 = vpop.permute.xlu0 %699
    %v702 = vsel %vm157, %v644, 0
    %v705 = vsel %vm69, %v700, 0
    %707 = vmatprep.subr.bf16.mxu0 0
    %708 = vmatpush1.bf16.msra.mxu0 %v705
    %709 = vmatprep.subr.bf16.mxu0 0
    %710 = vmatpush1.bf16.msra.mxu0 0
    %711 = vmatprep.subr.bf16.mxu0 0
    %712 = vmatpush1.bf16.msra.mxu0 0
    %713 = vmatprep.subr.bf16.mxu0 0
    %714 = vmatpush1.bf16.msra.mxu0 0
    %715 = vmatprep.subr.bf16.mxu0 0
    %716 = vmatpush1.bf16.msra.mxu0 0
    %717 = vmatprep.subr.bf16.mxu0 0
    %718 = vmatpush1.bf16.msra.mxu0 0
    %719 = vmatprep.subr.bf16.mxu0 0
    %720 = vmatpush1.bf16.msra.mxu0 0
    %721 = vmatprep.subr.bf16.mxu0 0
    %722 = vmatpush1.bf16.msra.mxu0 0
    %723 = vmatprep.subr.bf16.mxu0 0
    %724 = vmatpush1.bf16.msra.mxu0 0
    %725 = vmatprep.subr.bf16.mxu0 0
    %726 = vmatpush1.bf16.msra.mxu0 0
    %727 = vmatprep.subr.bf16.mxu0 0
    %728 = vmatpush1.bf16.msra.mxu0 0
    %729 = vmatprep.subr.bf16.mxu0 0
    %730 = vmatpush1.bf16.msra.mxu0 0
    %731 = vmatprep.subr.bf16.mxu0 0
    %732 = vmatpush1.bf16.msra.mxu0 0
    %733 = vmatprep.subr.bf16.mxu0 0
    %734 = vmatpush1.bf16.msra.mxu0 0
    %735 = vmatprep.subr.bf16.mxu0 0
    %736 = vmatpush1.bf16.msra.mxu0 0
    %737 = vmatprep.subr.bf16.mxu0 0
    %738 = vmatpush1.bf16.msra.mxu0 0
    %739 = vmatprep.mubr.bf16.mxu0 0
    %740 = vmatmul.mubr.bf16.gmra.mrb[0].mxu0 %v702
    %v741 = vpop.f32.mrb[0].mxu0
    %v742 = vadd.f32 0.0, %v741
    %v743 = vpop.f32.mrb[0].mxu0
    %v744 = vpop.f32.mrb[0].mxu0
    %v745 = vpop.f32.mrb[0].mxu0
    %746 = vdwg.mxu0
    %747 = vrot.lane.b32.xlu0 %v140, 112
    %v748 = vpop.permute.xlu0 %747
    %v750 = vsel %vm157, %v645, 0
    %v753 = vsel %vm69, %v748, 0
    %755 = vmatprep.subr.bf16.mxu0 0
    %756 = vmatpush1.bf16.msra.mxu0 %v753
    %757 = vmatprep.subr.bf16.mxu0 0
    %758 = vmatpush1.bf16.msra.mxu0 0
    %759 = vmatprep.subr.bf16.mxu0 0
    %760 = vmatpush1.bf16.msra.mxu0 0
    %761 = vmatprep.subr.bf16.mxu0 0
    %762 = vmatpush1.bf16.msra.mxu0 0
    %763 = vmatprep.subr.bf16.mxu0 0
    %764 = vmatpush1.bf16.msra.mxu0 0
    %765 = vmatprep.subr.bf16.mxu0 0
    %766 = vmatpush1.bf16.msra.mxu0 0
    %767 = vmatprep.subr.bf16.mxu0 0
    %768 = vmatpush1.bf16.msra.mxu0 0
    %769 = vmatprep.subr.bf16.mxu0 0
    %770 = vmatpush1.bf16.msra.mxu0 0
    %771 = vmatprep.subr.bf16.mxu0 0
    %772 = vmatpush1.bf16.msra.mxu0 0
    %773 = vmatprep.subr.bf16.mxu0 0
    %774 = vmatpush1.bf16.msra.mxu0 0
    %775 = vmatprep.subr.bf16.mxu0 0
    %776 = vmatpush1.bf16.msra.mxu0 0
    %777 = vmatprep.subr.bf16.mxu0 0
    %778 = vmatpush1.bf16.msra.mxu0 0
    %779 = vmatprep.subr.bf16.mxu0 0
    %780 = vmatpush1.bf16.msra.mxu0 0
    %781 = vmatprep.subr.bf16.mxu0 0
    %782 = vmatpush1.bf16.msra.mxu0 0
    %783 = vmatprep.subr.bf16.mxu0 0
    %784 = vmatpush1.bf16.msra.mxu0 0
    %785 = vmatprep.subr.bf16.mxu0 0
    %786 = vmatpush1.bf16.msra.mxu0 0
    %787 = vmatprep.mubr.bf16.mxu0 0
    %788 = vmatmul.mubr.bf16.gmra.mrb[0].mxu0 %v750
    %v789 = vpop.f32.mrb[0].mxu0
    %v790 = vadd.f32 0.0, %v789
    %v791 = vpop.f32.mrb[0].mxu0
    %v792 = vpop.f32.mrb[0].mxu0
    %v793 = vpop.f32.mrb[0].mxu0
    %794 = vdwg.mxu0
    %795 = vrot.lane.b32.xlu0 %v141, 112
    %v796 = vpop.permute.xlu0 %795
    %v798 = vsel %vm157, %v646, 0
    %v801 = vsel %vm69, %v796, 0
    %803 = vmatprep.subr.bf16.mxu0 0
    %804 = vmatpush1.bf16.msra.mxu0 %v801
    %805 = vmatprep.subr.bf16.mxu0 0
    %806 = vmatpush1.bf16.msra.mxu0 0
    %807 = vmatprep.subr.bf16.mxu0 0
    %808 = vmatpush1.bf16.msra.mxu0 0
    %809 = vmatprep.subr.bf16.mxu0 0
    %810 = vmatpush1.bf16.msra.mxu0 0
    %811 = vmatprep.subr.bf16.mxu0 0
    %812 = vmatpush1.bf16.msra.mxu0 0
    %813 = vmatprep.subr.bf16.mxu0 0
    %814 = vmatpush1.bf16.msra.mxu0 0
    %815 = vmatprep.subr.bf16.mxu0 0
    %816 = vmatpush1.bf16.msra.mxu0 0
    %817 = vmatprep.subr.bf16.mxu0 0
    %818 = vmatpush1.bf16.msra.mxu0 0
    %819 = vmatprep.subr.bf16.mxu0 0
    %820 = vmatpush1.bf16.msra.mxu0 0
    %821 = vmatprep.subr.bf16.mxu0 0
    %822 = vmatpush1.bf16.msra.mxu0 0
    %823 = vmatprep.subr.bf16.mxu0 0
    %824 = vmatpush1.bf16.msra.mxu0 0
    %825 = vmatprep.subr.bf16.mxu0 0
    %826 = vmatpush1.bf16.msra.mxu0 0
    %827 = vmatprep.subr.bf16.mxu0 0
    %828 = vmatpush1.bf16.msra.mxu0 0
    %829 = vmatprep.subr.bf16.mxu0 0
    %830 = vmatpush1.bf16.msra.mxu0 0
    %831 = vmatprep.subr.bf16.mxu0 0
    %832 = vmatpush1.bf16.msra.mxu0 0
    %833 = vmatprep.subr.bf16.mxu0 0
    %834 = vmatpush1.bf16.msra.mxu0 0
    %835 = vmatprep.mubr.bf16.mxu0 0
    %836 = vmatmul.mubr.bf16.gmra.mrb[0].mxu0 %v798
    %v837 = vpop.f32.mrb[0].mxu0
    %v838 = vadd.f32 0.0, %v837
    %v839 = vpop.f32.mrb[0].mxu0
    %v840 = vpop.f32.mrb[0].mxu0
    %v841 = vpop.f32.mrb[0].mxu0
    %842 = vdwg.mxu0
    %843 = vrot.lane.b32.xlu0 %v142, 112
    %v844 = vpop.permute.xlu0 %843
    %v846 = vsel %vm157, %v647, 0
    %v849 = vsel %vm69, %v844, 0
    %851 = vmatprep.subr.bf16.mxu0 0
    %852 = vmatpush1.bf16.msra.mxu0 %v849
    %853 = vmatprep.subr.bf16.mxu0 0
    %854 = vmatpush1.bf16.msra.mxu0 0
    %855 = vmatprep.subr.bf16.mxu0 0
    %856 = vmatpush1.bf16.msra.mxu0 0
    %857 = vmatprep.subr.bf16.mxu0 0
    %858 = vmatpush1.bf16.msra.mxu0 0
    %859 = vmatprep.subr.bf16.mxu0 0
    %860 = vmatpush1.bf16.msra.mxu0 0
    %861 = vmatprep.subr.bf16.mxu0 0
    %862 = vmatpush1.bf16.msra.mxu0 0
    %863 = vmatprep.subr.bf16.mxu0 0
    %864 = vmatpush1.bf16.msra.mxu0 0
    %865 = vmatprep.subr.bf16.mxu0 0
    %866 = vmatpush1.bf16.msra.mxu0 0
    %867 = vmatprep.subr.bf16.mxu0 0
    %868 = vmatpush1.bf16.msra.mxu0 0
    %869 = vmatprep.subr.bf16.mxu0 0
    %870 = vmatpush1.bf16.msra.mxu0 0
    %871 = vmatprep.subr.bf16.mxu0 0
    %872 = vmatpush1.bf16.msra.mxu0 0
    %873 = vmatprep.subr.bf16.mxu0 0
    %874 = vmatpush1.bf16.msra.mxu0 0
    %875 = vmatprep.subr.bf16.mxu0 0
    %876 = vmatpush1.bf16.msra.mxu0 0
    %877 = vmatprep.subr.bf16.mxu0 0
    %878 = vmatpush1.bf16.msra.mxu0 0
    %879 = vmatprep.subr.bf16.mxu0 0
    %880 = vmatpush1.bf16.msra.mxu0 0
    %881 = vmatprep.subr.bf16.mxu0 0
    %882 = vmatpush1.bf16.msra.mxu0 0
    %883 = vmatprep.mubr.bf16.mxu0 0
    %884 = vmatmul.mubr.bf16.gmra.mrb[0].mxu0 %v846
    %v885 = vpop.f32.mrb[0].mxu0
    %v886 = vadd.f32 0.0, %v885
    %v887 = vpop.f32.mrb[0].mxu0
    %v888 = vpop.f32.mrb[0].mxu0
    %v889 = vpop.f32.mrb[0].mxu0
    %890 = vdwg.mxu0
    %891 = vrot.lane.b32.xlu0 %v143, 112
    %v892 = vpop.permute.xlu0 %891
    %v894 = vsel %vm157, %v648, 0
    %v897 = vsel %vm69, %v892, 0
    %899 = vmatprep.subr.bf16.mxu0 0
    %900 = vmatpush1.bf16.msra.mxu0 %v897
    %901 = vmatprep.subr.bf16.mxu0 0
    %902 = vmatpush1.bf16.msra.mxu0 0
    %903 = vmatprep.subr.bf16.mxu0 0
    %904 = vmatpush1.bf16.msra.mxu0 0
    %905 = vmatprep.subr.bf16.mxu0 0
    %906 = vmatpush1.bf16.msra.mxu0 0
    %907 = vmatprep.subr.bf16.mxu0 0
    %908 = vmatpush1.bf16.msra.mxu0 0
    %909 = vmatprep.subr.bf16.mxu0 0
    %910 = vmatpush1.bf16.msra.mxu0 0
    %911 = vmatprep.subr.bf16.mxu0 0
    %912 = vmatpush1.bf16.msra.mxu0 0
    %913 = vmatprep.subr.bf16.mxu0 0
    %914 = vmatpush1.bf16.msra.mxu0 0
    %915 = vmatprep.subr.bf16.mxu0 0
    %916 = vmatpush1.bf16.msra.mxu0 0
    %917 = vmatprep.subr.bf16.mxu0 0
    %918 = vmatpush1.bf16.msra.mxu0 0
    %919 = vmatprep.subr.bf16.mxu0 0
    %920 = vmatpush1.bf16.msra.mxu0 0
    %921 = vmatprep.subr.bf16.mxu0 0
    %922 = vmatpush1.bf16.msra.mxu0 0
    %923 = vmatprep.subr.bf16.mxu0 0
    %924 = vmatpush1.bf16.msra.mxu0 0
    %925 = vmatprep.subr.bf16.mxu0 0
    %926 = vmatpush1.bf16.msra.mxu0 0
    %927 = vmatprep.subr.bf16.mxu0 0
    %928 = vmatpush1.bf16.msra.mxu0 0
    %929 = vmatprep.subr.bf16.mxu0 0
    %930 = vmatpush1.bf16.msra.mxu0 0
    %931 = vmatprep.mubr.bf16.mxu0 0
    %932 = vmatmul.mubr.bf16.gmra.mrb[0].mxu0 %v894
    %v933 = vpop.f32.mrb[0].mxu0
    %v934 = vadd.f32 0.0, %v933
    %v935 = vpop.f32.mrb[0].mxu0
    %v936 = vpop.f32.mrb[0].mxu0
    %v937 = vpop.f32.mrb[0].mxu0
    %938 = vdwg.mxu0
    %939 = vrot.lane.b32.xlu0 %v144, 112
    %v940 = vpop.permute.xlu0 %939
    %v942 = vsel %vm157, %v649, 0
    %v945 = vsel %vm69, %v940, 0
    %947 = vmatprep.subr.bf16.mxu0 0
    %948 = vmatpush1.bf16.msra.mxu0 %v945
    %949 = vmatprep.subr.bf16.mxu0 0
    %950 = vmatpush1.bf16.msra.mxu0 0
    %951 = vmatprep.subr.bf16.mxu0 0
    %952 = vmatpush1.bf16.msra.mxu0 0
    %953 = vmatprep.subr.bf16.mxu0 0
    %954 = vmatpush1.bf16.msra.mxu0 0
    %955 = vmatprep.subr.bf16.mxu0 0
    %956 = vmatpush1.bf16.msra.mxu0 0
    %957 = vmatprep.subr.bf16.mxu0 0
    %958 = vmatpush1.bf16.msra.mxu0 0
    %959 = vmatprep.subr.bf16.mxu0 0
    %960 = vmatpush1.bf16.msra.mxu0 0
    %961 = vmatprep.subr.bf16.mxu0 0
    %962 = vmatpush1.bf16.msra.mxu0 0
    %963 = vmatprep.subr.bf16.mxu0 0
    %964 = vmatpush1.bf16.msra.mxu0 0
    %965 = vmatprep.subr.bf16.mxu0 0
    %966 = vmatpush1.bf16.msra.mxu0 0
    %967 = vmatprep.subr.bf16.mxu0 0
    %968 = vmatpush1.bf16.msra.mxu0 0
    %969 = vmatprep.subr.bf16.mxu0 0
    %970 = vmatpush1.bf16.msra.mxu0 0
    %971 = vmatprep.subr.bf16.mxu0 0
    %972 = vmatpush1.bf16.msra.mxu0 0
    %973 = vmatprep.subr.bf16.mxu0 0
    %974 = vmatpush1.bf16.msra.mxu0 0
    %975 = vmatprep.subr.bf16.mxu0 0
    %976 = vmatpush1.bf16.msra.mxu0 0
    %977 = vmatprep.subr.bf16.mxu0 0
    %978 = vmatpush1.bf16.msra.mxu0 0
    %979 = vmatprep.mubr.bf16.mxu0 0
    %980 = vmatmul.mubr.bf16.gmra.mrb[0].mxu0 %v942
    %v981 = vpop.f32.mrb[0].mxu0
    %v982 = vadd.f32 0.0, %v981
    %v983 = vpop.f32.mrb[0].mxu0
    %v984 = vpop.f32.mrb[0].mxu0
    %v985 = vpop.f32.mrb[0].mxu0
    %986 = vdwg.mxu0
    %987 = vrot.lane.b32.xlu0 %v145, 112
    %v988 = vpop.permute.xlu0 %987
    %v990 = vsel %vm157, %v650, 0
    %v993 = vsel %vm69, %v988, 0
    %995 = vmatprep.subr.bf16.mxu0 0
    %996 = vmatpush1.bf16.msra.mxu0 %v993
    %997 = vmatprep.subr.bf16.mxu0 0
    %998 = vmatpush1.bf16.msra.mxu0 0
    %999 = vmatprep.subr.bf16.mxu0 0
    %1000 = vmatpush1.bf16.msra.mxu0 0
    %1001 = vmatprep.subr.bf16.mxu0 0
    %1002 = vmatpush1.bf16.msra.mxu0 0
    %1003 = vmatprep.subr.bf16.mxu0 0
    %1004 = vmatpush1.bf16.msra.mxu0 0
    %1005 = vmatprep.subr.bf16.mxu0 0
    %1006 = vmatpush1.bf16.msra.mxu0 0
    %1007 = vmatprep.subr.bf16.mxu0 0
    %1008 = vmatpush1.bf16.msra.mxu0 0
    %1009 = vmatprep.subr.bf16.mxu0 0
    %1010 = vmatpush1.bf16.msra.mxu0 0
    %1011 = vmatprep.subr.bf16.mxu0 0
    %1012 = vmatpush1.bf16.msra.mxu0 0
    %1013 = vmatprep.subr.bf16.mxu0 0
    %1014 = vmatpush1.bf16.msra.mxu0 0
    %1015 = vmatprep.subr.bf16.mxu0 0
    %1016 = vmatpush1.bf16.msra.mxu0 0
    %1017 = vmatprep.subr.bf16.mxu0 0
    %1018 = vmatpush1.bf16.msra.mxu0 0
    %1019 = vmatprep.subr.bf16.mxu0 0
    %1020 = vmatpush1.bf16.msra.mxu0 0
    %1021 = vmatprep.subr.bf16.mxu0 0
    %1022 = vmatpush1.bf16.msra.mxu0 0
    %1023 = vmatprep.subr.bf16.mxu0 0
    %1024 = vmatpush1.bf16.msra.mxu0 0
    %1025 = vmatprep.subr.bf16.mxu0 0
    %1026 = vmatpush1.bf16.msra.mxu0 0
    %1027 = vmatprep.mubr.bf16.mxu0 0
    %1028 = vmatmul.mubr.bf16.gmra.mrb[0].mxu0 %v990
    %v1029 = vpop.f32.mrb[0].mxu0
    %v1030 = vadd.f32 0.0, %v1029
    %v1031 = vpop.f32.mrb[0].mxu0
    %v1032 = vpop.f32.mrb[0].mxu0
    %v1033 = vpop.f32.mrb[0].mxu0
    %1034 = vdwg.mxu0
    %v1035 = vpack.c.bf16 %v742, %v694
    %v1036 = vpack.c.bf16 %v838, %v790
    %v1037 = vpack.c.bf16 %v934, %v886
    %v1038 = vpack.c.bf16 %v1030, %v982
    %v1039 = vld [vmem:[%s4] sm:$0xf]
    %v1040 = vld [vmem:[%s4 + $0x4] sm:$0xf]
    %v1041 = vld [vmem:[%s4 + $0x8] sm:$0xf]
    %v1042 = vld [vmem:[%s4 + $0xc] sm:$0xf]
    %v1044 = vsel %vm157, %v1035, 0
    %v1047 = vsel %vm69, %v1039, 0
    %1049 = vmatprep.subr.bf16.mxu0 0
    %1050 = vmatpush1.bf16.msra.mxu0 %v1047
    %1051 = vmatprep.subr.bf16.mxu0 0
    %1052 = vmatpush1.bf16.msra.mxu0 0
    %1053 = vmatprep.subr.bf16.mxu0 0
    %1054 = vmatpush1.bf16.msra.mxu0 0
    %1055 = vmatprep.subr.bf16.mxu0 0
    %1056 = vmatpush1.bf16.msra.mxu0 0
    %1057 = vmatprep.subr.bf16.mxu0 0
    %1058 = vmatpush1.bf16.msra.mxu0 0
    %1059 = vmatprep.subr.bf16.mxu0 0
    %1060 = vmatpush1.bf16.msra.mxu0 0
    %1061 = vmatprep.subr.bf16.mxu0 0
    %1062 = vmatpush1.bf16.msra.mxu0 0
    %1063 = vmatprep.subr.bf16.mxu0 0
    %1064 = vmatpush1.bf16.msra.mxu0 0
    %1065 = vmatprep.subr.bf16.mxu0 0
    %1066 = vmatpush1.bf16.msra.mxu0 0
    %1067 = vmatprep.subr.bf16.mxu0 0
    %1068 = vmatpush1.bf16.msra.mxu0 0
    %1069 = vmatprep.subr.bf16.mxu0 0
    %1070 = vmatpush1.bf16.msra.mxu0 0
    %1071 = vmatprep.subr.bf16.mxu0 0
    %1072 = vmatpush1.bf16.msra.mxu0 0
    %1073 = vmatprep.subr.bf16.mxu0 0
    %1074 = vmatpush1.bf16.msra.mxu0 0
    %1075 = vmatprep.subr.bf16.mxu0 0
    %1076 = vmatpush1.bf16.msra.mxu0 0
    %1077 = vmatprep.subr.bf16.mxu0 0
    %1078 = vmatpush1.bf16.msra.mxu0 0
    %1079 = vmatprep.subr.bf16.mxu0 0
    %1080 = vmatpush1.bf16.msra.mxu0 0
    %1081 = vmatprep.mubr.bf16.mxu0 0
    %1082 = vmatmul.mubr.bf16.gmra.mrb[0].mxu0 %v1044
    %v1083 = vpop.f32.mrb[0].mxu0
    %v1084 = vadd.f32 0.0, %v1083
    %v1085 = vpop.f32.mrb[0].mxu0
    %v1086 = vpop.f32.mrb[0].mxu0
    %v1087 = vadd.f32 0.0, %v1086
    %v1088 = vpop.f32.mrb[0].mxu0
    %1089 = vdwg.mxu0
    %v1091 = vsel %vm157, %v1036, 0
    %v1094 = vsel %vm69, %v1040, 0
    %1096 = vmatprep.subr.bf16.mxu0 0
    %1097 = vmatpush1.bf16.msra.mxu0 %v1094
    %1098 = vmatprep.subr.bf16.mxu0 0
    %1099 = vmatpush1.bf16.msra.mxu0 0
    %1100 = vmatprep.subr.bf16.mxu0 0
    %1101 = vmatpush1.bf16.msra.mxu0 0
    %1102 = vmatprep.subr.bf16.mxu0 0
    %1103 = vmatpush1.bf16.msra.mxu0 0
    %1104 = vmatprep.subr.bf16.mxu0 0
    %1105 = vmatpush1.bf16.msra.mxu0 0
    %1106 = vmatprep.subr.bf16.mxu0 0
    %1107 = vmatpush1.bf16.msra.mxu0 0
    %1108 = vmatprep.subr.bf16.mxu0 0
    %1109 = vmatpush1.bf16.msra.mxu0 0
    %1110 = vmatprep.subr.bf16.mxu0 0
    %1111 = vmatpush1.bf16.msra.mxu0 0
    %1112 = vmatprep.subr.bf16.mxu0 0
    %1113 = vmatpush1.bf16.msra.mxu0 0
    %1114 = vmatprep.subr.bf16.mxu0 0
    %1115 = vmatpush1.bf16.msra.mxu0 0
    %1116 = vmatprep.subr.bf16.mxu0 0
    %1117 = vmatpush1.bf16.msra.mxu0 0
    %1118 = vmatprep.subr.bf16.mxu0 0
    %1119 = vmatpush1.bf16.msra.mxu0 0
    %1120 = vmatprep.subr.bf16.mxu0 0
    %1121 = vmatpush1.bf16.msra.mxu0 0
    %1122 = vmatprep.subr.bf16.mxu0 0
    %1123 = vmatpush1.bf16.msra.mxu0 0
    %1124 = vmatprep.subr.bf16.mxu0 0
    %1125 = vmatpush1.bf16.msra.mxu0 0
    %1126 = vmatprep.subr.bf16.mxu0 0
    %1127 = vmatpush1.bf16.msra.mxu0 0
    %1128 = vmatprep.mubr.bf16.mxu0 0
    %1129 = vmatmul.mubr.bf16.gmra.mrb[0].mxu0 %v1091
    %v1130 = vpop.f32.mrb[0].mxu0
    %v1131 = vadd.f32 0.0, %v1130
    %v1132 = vpop.f32.mrb[0].mxu0
    %v1133 = vpop.f32.mrb[0].mxu0
    %v1134 = vadd.f32 0.0, %v1133
    %v1135 = vpop.f32.mrb[0].mxu0
    %1136 = vdwg.mxu0
    %v1138 = vsel %vm157, %v1037, 0
    %v1141 = vsel %vm69, %v1041, 0
    %1143 = vmatprep.subr.bf16.mxu0 0
    %1144 = vmatpush1.bf16.msra.mxu0 %v1141
    %1145 = vmatprep.subr.bf16.mxu0 0
    %1146 = vmatpush1.bf16.msra.mxu0 0
    %1147 = vmatprep.subr.bf16.mxu0 0
    %1148 = vmatpush1.bf16.msra.mxu0 0
    %1149 = vmatprep.subr.bf16.mxu0 0
    %1150 = vmatpush1.bf16.msra.mxu0 0
    %1151 = vmatprep.subr.bf16.mxu0 0
    %1152 = vmatpush1.bf16.msra.mxu0 0
    %1153 = vmatprep.subr.bf16.mxu0 0
    %1154 = vmatpush1.bf16.msra.mxu0 0
    %1155 = vmatprep.subr.bf16.mxu0 0
    %1156 = vmatpush1.bf16.msra.mxu0 0
    %1157 = vmatprep.subr.bf16.mxu0 0
    %1158 = vmatpush1.bf16.msra.mxu0 0
    %1159 = vmatprep.subr.bf16.mxu0 0
    %1160 = vmatpush1.bf16.msra.mxu0 0
    %1161 = vmatprep.subr.bf16.mxu0 0
    %1162 = vmatpush1.bf16.msra.mxu0 0
    %1163 = vmatprep.subr.bf16.mxu0 0
    %1164 = vmatpush1.bf16.msra.mxu0 0
    %1165 = vmatprep.subr.bf16.mxu0 0
    %1166 = vmatpush1.bf16.msra.mxu0 0
    %1167 = vmatprep.subr.bf16.mxu0 0
    %1168 = vmatpush1.bf16.msra.mxu0 0
    %1169 = vmatprep.subr.bf16.mxu0 0
    %1170 = vmatpush1.bf16.msra.mxu0 0
    %1171 = vmatprep.subr.bf16.mxu0 0
    %1172 = vmatpush1.bf16.msra.mxu0 0
    %1173 = vmatprep.subr.bf16.mxu0 0
    %1174 = vmatpush1.bf16.msra.mxu0 0
    %1175 = vmatprep.mubr.bf16.mxu0 0
    %1176 = vmatmul.mubr.bf16.gmra.mrb[0].mxu0 %v1138
    %v1177 = vpop.f32.mrb[0].mxu0
    %v1178 = vadd.f32 0.0, %v1177
    %v1179 = vpop.f32.mrb[0].mxu0
    %v1180 = vpop.f32.mrb[0].mxu0
    %v1181 = vadd.f32 0.0, %v1180
    %v1182 = vpop.f32.mrb[0].mxu0
    %1183 = vdwg.mxu0
    %v1185 = vsel %vm157, %v1038, 0
    %v1188 = vsel %vm69, %v1042, 0
    %1190 = vmatprep.subr.bf16.mxu0 0
    %1191 = vmatpush1.bf16.msra.mxu0 %v1188
    %1192 = vmatprep.subr.bf16.mxu0 0
    %1193 = vmatpush1.bf16.msra.mxu0 0
    %1194 = vmatprep.subr.bf16.mxu0 0
    %1195 = vmatpush1.bf16.msra.mxu0 0
    %1196 = vmatprep.subr.bf16.mxu0 0
    %1197 = vmatpush1.bf16.msra.mxu0 0
    %1198 = vmatprep.subr.bf16.mxu0 0
    %1199 = vmatpush1.bf16.msra.mxu0 0
    %1200 = vmatprep.subr.bf16.mxu0 0
    %1201 = vmatpush1.bf16.msra.mxu0 0
    %1202 = vmatprep.subr.bf16.mxu0 0
    %1203 = vmatpush1.bf16.msra.mxu0 0
    %1204 = vmatprep.subr.bf16.mxu0 0
    %1205 = vmatpush1.bf16.msra.mxu0 0
    %1206 = vmatprep.subr.bf16.mxu0 0
    %1207 = vmatpush1.bf16.msra.mxu0 0
    %1208 = vmatprep.subr.bf16.mxu0 0
    %1209 = vmatpush1.bf16.msra.mxu0 0
    %1210 = vmatprep.subr.bf16.mxu0 0
    %1211 = vmatpush1.bf16.msra.mxu0 0
    %1212 = vmatprep.subr.bf16.mxu0 0
    %1213 = vmatpush1.bf16.msra.mxu0 0
    %1214 = vmatprep.subr.bf16.mxu0 0
    %1215 = vmatpush1.bf16.msra.mxu0 0
    %1216 = vmatprep.subr.bf16.mxu0 0
    %1217 = vmatpush1.bf16.msra.mxu0 0
    %1218 = vmatprep.subr.bf16.mxu0 0
    %1219 = vmatpush1.bf16.msra.mxu0 0
    %1220 = vmatprep.subr.bf16.mxu0 0
    %1221 = vmatpush1.bf16.msra.mxu0 0
    %1222 = vmatprep.mubr.bf16.mxu0 0
    %1223 = vmatmul.mubr.bf16.gmra.mrb[0].mxu0 %v1185
    %v1224 = vpop.f32.mrb[0].mxu0
    %v1225 = vadd.f32 0.0, %v1224
    %v1226 = vpop.f32.mrb[0].mxu0
    %v1227 = vpop.f32.mrb[0].mxu0
    %v1228 = vadd.f32 0.0, %v1227
    %v1229 = vpop.f32.mrb[0].mxu0
    %1230 = vdwg.mxu0
    %vm1231 = vcmask 261120
    %v1232 = vsel %vm1231, %v1084, 0.0
    %v1233 = vsel %vm1231, %v1131, 0.0
    %v1234 = vadd.f32 %v1232, %v1233
    %v1235 = vsel %vm1231, %v1178, 0.0
    %v1236 = vadd.f32 %v1234, %v1235
    %v1237 = vsel %vm1231, %v1225, 0.0
    %v1238 = vadd.f32 %v1236, %v1237
    %v1239 = vsel %vm1231, %v1087, 0.0
    %v1240 = vsel %vm1231, %v1134, 0.0
    %v1241 = vadd.f32 %v1239, %v1240
    %v1242 = vsel %vm1231, %v1181, 0.0
    %v1243 = vadd.f32 %v1241, %v1242
    %v1244 = vsel %vm1231, %v1228, 0.0
    %v1245 = vadd.f32 %v1243, %v1244
    %v1246 = vlaneseq
    %v1247 = vshrl.u32 %v1246, 7
    %v1248 = vsub.s32 0, %v1247
    %v1249 = vrot.slane %v31, %v1248
    %v1250 = vadd.f32 %v1238, %v1249
    %v1251 = vadd.f32 %v1245, %v1249
    %v1252 = vld [vmem:[%s1] sm:$0xff]
    %v1253 = vld [vmem:[%s1 + $0x8] sm:$0xff]
    %v1254 = vadd.f32 %v1250, %v1252
    %v1255 = vadd.f32 %v1251, %v1253
    %v1256 = vsel %vm1231, %v1254, 0.0
    %1257 = vadd.xlane.f32.xlu0 %v1256
    %v1258 = vpop.xlane.xlu0 %1257
    %v1259 = vsel %vm1231, %v1255, 0.0
    %1260 = vadd.xlane.f32.xlu0 %v1259
    %v1261 = vpop.xlane.xlu0 %1260
    %v1262 = vrcp.pop 32.0
    %v1263 = vmul.f32 %v1258, %v1262
    %v1264 = vmul.f32 %v1261, %v1262
    %v1265 = vsub.f32 %v1254, %v1263
    %v1266 = vsub.f32 %v1255, %v1264
    %v1267 = vmul.f32 %v1265, %v1265
    %v1268 = vmul.f32 %v1266, %v1266
    %v1269 = vsel %vm1231, %v1267, 0.0
    %1270 = vadd.xlane.f32.xlu0 %v1269
    %v1271 = vpop.xlane.xlu0 %1270
    %v1272 = vsel %vm1231, %v1268, 0.0
    %1273 = vadd.xlane.f32.xlu0 %v1272
    %v1274 = vpop.xlane.xlu0 %1273
    %v1275 = vmul.f32 %v1271, %v1262
    %v1276 = vmul.f32 %v1274, %v1262
    %v1277 = vadd.f32 %v1275, 1e-05
    %v1278 = vadd.f32 %v1276, 1e-05
    %v1279 = vrsqrt.pop %v1277
    %v1280 = vrsqrt.pop %v1278
    %v1281 = vmul.f32 %v1265, %v1279
    %v1282 = vmul.f32 %v1266, %v1280
    %v1283 = vlaneseq
    %v1284 = vshrl.u32 %v1283, 7
    %v1285 = vsub.s32 1, %v1284
    %v1286 = vrot.slane %v31, %v1285
    %v1287 = vmul.f32 %v1281, %v1286
    %v1288 = vmul.f32 %v1282, %v1286
    %v1289 = vlaneseq
    %v1290 = vshrl.u32 %v1289, 7
    %v1291 = vsub.s32 2, %v1290
    %v1292 = vrot.slane %v31, %v1291
    %v1293 = vadd.f32 %v1287, %v1292
    %v1294 = vadd.f32 %v1288, %v1292
    %v1295 = vpack.c.bf16 %v1294, %v1293
    %v1296 = vld [vmem:[%s5] sm:$0xf]
    %v1297 = vld [vmem:[%s5 + $0x4] sm:$0xf]
    %v1298 = vld [vmem:[%s5 + $0x8] sm:$0xf]
    %v1299 = vld [vmem:[%s5 + $0xc] sm:$0xf]
    %v1300 = vlaneseq
    %v1301 = vshrl.u32 %v1300, 7
    %v1302 = vsub.s32 3, %v1301
    %v1303 = vrot.slane %v31, %v1302
    %v1308 = vunpack.c.l.b16 %v1296
    %v1309 = vunpack.c.l.b16 %v1297
    %v1310 = vunpack.c.l.b16 %v1298
    %v1311 = vunpack.c.l.b16 %v1299
    %v1312 = vpack.c.b16 %v1309, %v1308
    %v1313 = vpack.c.b16 %v1311, %v1310
    %v1317 = vsel %vm1231, %v1295, 0
    %1319 = vmatprep.subr.bf16.mxu0 0
    %1320 = vmatpush1.bf16.msra.mxu0 %v1312
    %1321 = vmatprep.subr.bf16.mxu0 0
    %1322 = vmatpush1.bf16.msra.mxu0 %v1313
    %1323 = vmatprep.subr.bf16.mxu0 0
    %1324 = vmatpush1.bf16.msra.mxu0 0
    %1325 = vmatprep.subr.bf16.mxu0 0
    %1326 = vmatpush1.bf16.msra.mxu0 0
    %1327 = vmatprep.subr.bf16.mxu0 0
    %1328 = vmatpush1.bf16.msra.mxu0 0
    %1329 = vmatprep.subr.bf16.mxu0 0
    %1330 = vmatpush1.bf16.msra.mxu0 0
    %1331 = vmatprep.subr.bf16.mxu0 0
    %1332 = vmatpush1.bf16.msra.mxu0 0
    %1333 = vmatprep.subr.bf16.mxu0 0
    %1334 = vmatpush1.bf16.msra.mxu0 0
    %1335 = vmatprep.subr.bf16.mxu0 0
    %1336 = vmatpush1.bf16.msra.mxu0 0
    %1337 = vmatprep.subr.bf16.mxu0 0
    %1338 = vmatpush1.bf16.msra.mxu0 0
    %1339 = vmatprep.subr.bf16.mxu0 0
    %1340 = vmatpush1.bf16.msra.mxu0 0
    %1341 = vmatprep.subr.bf16.mxu0 0
    %1342 = vmatpush1.bf16.msra.mxu0 0
    %1343 = vmatprep.subr.bf16.mxu0 0
    %1344 = vmatpush1.bf16.msra.mxu0 0
    %1345 = vmatprep.subr.bf16.mxu0 0
    %1346 = vmatpush1.bf16.msra.mxu0 0
    %1347 = vmatprep.subr.bf16.mxu0 0
    %1348 = vmatpush1.bf16.msra.mxu0 0
    %1349 = vmatprep.subr.bf16.mxu0 0
    %1350 = vmatpush1.bf16.msra.mxu0 0
    %1351 = vmatprep.mubr.bf16.mxu0 0
    %1352 = vmatmul.mubr.bf16.gmra.mrb[0].mxu0 %v1317
    %v1353 = vpop.f32.mrb[0].mxu0
    %v1354 = vadd.f32 %v1303, %v1353
    %v1355 = vpop.f32.mrb[0].mxu0
    %v1356 = vpop.f32.mrb[0].mxu0
    %v1357 = vadd.f32 %v1303, %v1356
    %v1358 = vpop.f32.mrb[0].mxu0
    %1359 = vdwg.mxu0
    %v1360 = vmax.f32 %v1354, 0.0
    %v1361 = vmax.f32 %v1357, 0.0
    %v1362 = vpack.c.bf16 %v1361, %v1360
    %v1363 = vld [vmem:[%s6] sm:$0xf]
    %v1364 = vld [vmem:[%s6 + $0x4] sm:$0xf]
    %v1365 = vld [vmem:[%s6 + $0x8] sm:$0xf]
    %v1366 = vld [vmem:[%s6 + $0xc] sm:$0xf]
    %v1367 = vld [vmem:[%s6 + $0x10] sm:$0xf]
    %v1368 = vld [vmem:[%s6 + $0x14] sm:$0xf]
    %v1369 = vld [vmem:[%s6 + $0x18] sm:$0xf]
    %v1370 = vld [vmem:[%s6 + $0x1c] sm:$0xf]
    %v1371 = vld [vmem:[%s6 + $0x20] sm:$0xf]
    %v1372 = vld [vmem:[%s6 + $0x24] sm:$0xf]
    %v1373 = vld [vmem:[%s6 + $0x28] sm:$0xf]
    %v1374 = vld [vmem:[%s6 + $0x2c] sm:$0xf]
    %v1375 = vld [vmem:[%s6 + $0x30] sm:$0xf]
    %v1376 = vld [vmem:[%s6 + $0x34] sm:$0xf]
    %v1377 = vld [vmem:[%s6 + $0x38] sm:$0xf]
    %v1378 = vld [vmem:[%s6 + $0x3c] sm:$0xf]
    %v1379 = vlaneseq
    %v1380 = vshrl.u32 %v1379, 7
    %v1381 = vsub.s32 4, %v1380
    %v1382 = vrot.slane %v31, %v1381
    %v1399 = vunpack.c.l.b16 %v1363
    %v1400 = vunpack.c.l.b16 %v1364
    %v1401 = vunpack.c.l.b16 %v1365
    %v1402 = vunpack.c.l.b16 %v1366
    %v1403 = vunpack.c.l.b16 %v1367
    %v1404 = vunpack.c.l.b16 %v1368
    %v1405 = vunpack.c.l.b16 %v1369
    %v1406 = vunpack.c.l.b16 %v1370
    %v1407 = vunpack.c.l.b16 %v1371
    %v1408 = vunpack.c.l.b16 %v1372
    %v1409 = vunpack.c.l.b16 %v1373
    %v1410 = vunpack.c.l.b16 %v1374
    %v1411 = vunpack.c.l.b16 %v1375
    %v1412 = vunpack.c.l.b16 %v1376
    %v1413 = vunpack.c.l.b16 %v1377
    %v1414 = vunpack.c.l.b16 %v1378
    %v1415 = vpack.c.b16 %v1400, %v1399
    %v1416 = vpack.c.b16 %v1402, %v1401
    %v1417 = vpack.c.b16 %v1404, %v1403
    %v1418 = vpack.c.b16 %v1406, %v1405
    %v1419 = vpack.c.b16 %v1408, %v1407
    %v1420 = vpack.c.b16 %v1410, %v1409
    %v1421 = vpack.c.b16 %v1412, %v1411
    %v1422 = vpack.c.b16 %v1414, %v1413
    %1431 = vmatprep.subr.bf16.mxu0 0
    %1432 = vmatpush1.bf16.msra.mxu0 %v1415
    %1433 = vmatprep.subr.bf16.mxu0 0
    %1434 = vmatpush1.bf16.msra.mxu0 %v1416
    %1435 = vmatprep.subr.bf16.mxu0 0
    %1436 = vmatpush1.bf16.msra.mxu0 %v1417
    %1437 = vmatprep.subr.bf16.mxu0 0
    %1438 = vmatpush1.bf16.msra.mxu0 %v1418
    %1439 = vmatprep.subr.bf16.mxu0 0
    %1440 = vmatpush1.bf16.msra.mxu0 %v1419
    %1441 = vmatprep.subr.bf16.mxu0 0
    %1442 = vmatpush1.bf16.msra.mxu0 %v1420
    %1443 = vmatprep.subr.bf16.mxu0 0
    %1444 = vmatpush1.bf16.msra.mxu0 %v1421
    %1445 = vmatprep.subr.bf16.mxu0 0
    %1446 = vmatpush1.bf16.msra.mxu0 %v1422
    %1447 = vmatprep.subr.bf16.mxu0 0
    %1448 = vmatpush1.bf16.msra.mxu0 0
    %1449 = vmatprep.subr.bf16.mxu0 0
    %1450 = vmatpush1.bf16.msra.mxu0 0
    %1451 = vmatprep.subr.bf16.mxu0 0
    %1452 = vmatpush1.bf16.msra.mxu0 0
    %1453 = vmatprep.subr.bf16.mxu0 0
    %1454 = vmatpush1.bf16.msra.mxu0 0
    %1455 = vmatprep.subr.bf16.mxu0 0
    %1456 = vmatpush1.bf16.msra.mxu0 0
    %1457 = vmatprep.subr.bf16.mxu0 0
    %1458 = vmatpush1.bf16.msra.mxu0 0
    %1459 = vmatprep.subr.bf16.mxu0 0
    %1460 = vmatpush1.bf16.msra.mxu0 0
    %1461 = vmatprep.subr.bf16.mxu0 0
    %1462 = vmatpush1.bf16.msra.mxu0 0
    %1463 = vmatprep.mubr.bf16.mxu0 0
    %1464 = vmatmul.mubr.bf16.gmra.mrb[0].mxu0 %v1362
    %v1465 = vpop.f32.mrb[0].mxu0
    %v1466 = vadd.f32 %v1382, %v1465
    %v1467 = vpop.f32.mrb[0].mxu0
    %v1468 = vpop.f32.mrb[0].mxu0
    %v1469 = vadd.f32 %v1382, %v1468
    %v1470 = vpop.f32.mrb[0].mxu0
    %1471 = vdwg.mxu0
    %v1472 = vadd.f32 %v1466, %v1293
    %v1473 = vadd.f32 %v1469, %v1294
    %v1474 = vsel %vm1231, %v1472, 0.0
    %1475 = vadd.xlane.f32.xlu0 %v1474
    %v1476 = vpop.xlane.xlu0 %1475
    %v1477 = vsel %vm1231, %v1473, 0.0
    %1478 = vadd.xlane.f32.xlu0 %v1477
    %v1479 = vpop.xlane.xlu0 %1478
    %v1480 = vmul.f32 %v1476, %v1262
    %v1481 = vmul.f32 %v1479, %v1262
    %v1482 = vsub.f32 %v1472, %v1480
    %v1483 = vsub.f32 %v1473, %v1481
    %v1484 = vmul.f32 %v1482, %v1482
    %v1485 = vmul.f32 %v1483, %v1483
    %v1486 = vsel %vm1231, %v1484, 0.0
    %1487 = vadd.xlane.f32.xlu0 %v1486
    %v1488 = vpop.xlane.xlu0 %1487
    %v1489 = vsel %vm1231, %v1485, 0.0
    %1490 = vadd.xlane.f32.xlu0 %v1489
    %v1491 = vpop.xlane.xlu0 %1490
    %v1492 = vmul.f32 %v1488, %v1262
    %v1493 = vmul.f32 %v1491, %v1262
    %v1494 = vadd.f32 %v1492, 1e-05
    %v1495 = vadd.f32 %v1493, 1e-05
    %v1496 = vrsqrt.pop %v1494
    %v1497 = vrsqrt.pop %v1495
    %v1498 = vmul.f32 %v1482, %v1496
    %v1499 = vmul.f32 %v1483, %v1497
    %v1500 = vlaneseq
    %v1501 = vshrl.u32 %v1500, 7
    %v1502 = vsub.s32 5, %v1501
    %v1503 = vrot.slane %v31, %v1502
    %v1504 = vmul.f32 %v1498, %v1503
    %v1505 = vmul.f32 %v1499, %v1503
    %v1506 = vlaneseq
    %v1507 = vshrl.u32 %v1506, 7
    %v1508 = vsub.s32 6, %v1507
    %v1509 = vrot.slane %v31, %v1508
    %v1510 = vadd.f32 %v1504, %v1509
    %v1511 = vadd.f32 %v1505, %v1509
    %1512 = vst.msk [vmem:[#allocation2] sm:$0xff] %vm1231, %v1510
    %1513 = vst.msk [vmem:[#allocation2 + $0x8] sm:$0xff] %vm1231, %v1511
    // Predicated region
    $region34: #{transformer_block.1} parent=1 // pred_check
      _
    $region35: #{transformer_block.1} parent=1 // pred_check_branch
      %1515 = sbr.rel (0) target = $region37
    $region36: #{transformer_block.1} parent=1 // pred_region
      %s1517 = ssub.s32 256, 256
      %1518 = vsyncadd [#allocation3], %s1517
      %s1519 = sshll.u32 [#allocation2], 4
      %s1520 = int_to_ptr.vmem [resolvable:$true] %s1519
      %1525 = dma.vmem_to_hbm [thread:$0]  %s1520, 256, %s8, [#allocation3], 128, 128, 8
    $region37: #{transformer_block.1} parent=1 // pred_fallthru
      _
    // Predicated region
    $region38: #{transformer_block.1} parent=1 // pred_check
      _
    $region39: #{transformer_block.1} parent=1 // pred_check_branch
      %1527 = sbr.rel (0) target = $region41
    $region40: #{transformer_block.1} parent=1 // pred_region
      %1528 = dma.done [#allocation3], 256
    $region41: #{transformer_block.1} parent=1 // pred_fallthru
      _
    %1529 = vsyncpa [#allocation3], 1

</llo_original>
